<compile_context>
chip_gen: v7x
topology: tpu7x:2x2x1
jax: 0.10.0
libtpu: 0.0.40
codegen_flags: <defaults>
</compile_context>

<pallas_src>
import functools
import math

import jax
import jax.numpy as jnp
from jax.experimental import pallas as pl
from jax.experimental.pallas import tpu as pltpu

EPS = 1e-12          # LayerNorm eps used by the reference implementation
NEG_INF = -1e30      # online-softmax init (finite to avoid inf-inf NaNs)
MASK_BIAS = -10000.0 # additive mask value (matches reference's where(mask==0, -10000))


def _layer_norm_f32(v, gamma, beta):
    mean = jnp.mean(v, axis=-1, keepdims=True)
    cent = v - mean
    var = jnp.mean(cent * cent, axis=-1, keepdims=True)    # unbiased=False
    return gamma * cent * jax.lax.rsqrt(var + EPS) + beta  # rsqrt -> EUP


def _pick_vmem_limit_bytes():
    # Explicit scoped-VMEM budget with headroom (v7x has only 64 MiB / TensorCore).
    try:
        cap = int(pltpu.get_tpu_info().vmem_capacity_bytes)
        return int(min(3 * cap // 4, 96 * 1024 * 1024))
    except Exception:
        return 32 * 1024 * 1024


def _const_spec(a):
    """Full-array block, constant index map, single-buffered (never re-fetched)."""
    nd = a.ndim
    idx = lambda *_, nd=nd: (0,) * nd
    buffered = getattr(pl, "Buffered", None)
    if buffered is not None:
        try:
            return pl.BlockSpec(a.shape, idx, pipeline_mode=buffered(1))
        except TypeError:          # older BlockSpec without pipeline_mode kwarg
            pass
    return pl.BlockSpec(a.shape, idx)


# --------------------------- kernel A: fused QKV projection ---------------------------
def _qkv_proj_kernel(x_ref, w_ref, b_ref, q_ref, k_ref, v_ref, *, n_head, scale):
    x = x_ref[0]                                            # (ts, D) bf16
    d_model = x.shape[1]
    dh = d_model // n_head

    # One (ts, D) x (D, 3D) matmul on the MXU, f32 accumulation.
    acc = jnp.dot(x, w_ref[...], preferred_element_type=jnp.float32)
    acc = acc + b_ref[...].astype(jnp.float32)              # (ts, 3D) f32

    # Per-head stores straight into the (B, H, S, dh) attention layout:
    # no host-side transpose, no lane-splitting reshape in the hot loop.
    # 1/sqrt(dh) is folded into Q here (once per element, not once per score).
    for h in range(n_head):
        lo = h * dh
        q_ref[0, h] = (acc[:, lo:lo + dh] * scale).astype(q_ref.dtype)
        k_ref[0, h] = acc[:, d_model + lo:d_model + lo + dh].astype(k_ref.dtype)
        v_ref[0, h] = acc[:, 2 * d_model + lo:2 * d_model + lo + dh].astype(v_ref.dtype)


# ------------------ kernel B: flash attention + out-proj + LN + FFN + LN ------------------
def _encoder_block_kernel(x_ref, q_ref, k_ref, v_ref, bias_ref,
                          wo_ref, bo_ref, g1_ref, be1_ref,
                          w1_ref, b1_ref, w2_ref, b2_ref,
                          g2_ref, be2_ref,
                          o_ref,
                          m_sc, l_sc, acc_sc):
    ki = pl.program_id(2)
    nk = pl.num_programs(2)

    @pl.when(ki == 0)
    def _init():
        m_sc[...] = jnp.full_like(m_sc, NEG_INF)
        l_sc[...] = jnp.zeros_like(l_sc)
        acc_sc[...] = jnp.zeros_like(acc_sc)

    q = q_ref[0]                                            # (H, tq, dh) bf16 (pre-scaled)
    k = k_ref[0]                                            # (H, tk, dh) bf16
    v = v_ref[0]                                            # (H, tk, dh) bf16

    # Head-batched scores on the MXU (bf16 operands, f32 accumulate).
    # Scale is already folded into q; bias broadcasts over the head dim.
    s = jnp.einsum('hqd,hkd->hqk', q, k, preferred_element_type=jnp.float32)
    s = s + bias_ref[0].astype(jnp.float32)[None, :, :]

    # Online softmax over kv tiles.
    m_prev = m_sc[...]
    m_new = jnp.maximum(m_prev, jnp.max(s, axis=-1, keepdims=True))
    alpha = jnp.exp(m_prev - m_new)
    p = jnp.exp(s - m_new)
    l_sc[...] = alpha * l_sc[...] + jnp.sum(p, axis=-1, keepdims=True)
    acc_sc[...] = alpha * acc_sc[...] + jnp.einsum(
        'hqk,hkd->hqd', p.astype(v.dtype), v, preferred_element_type=jnp.float32)
    m_sc[...] = m_new

    @pl.when(ki == nk - 1)
    def _finalize():
        inv_l = pl.reciprocal(l_sc[...], approx=True)       # EUP reciprocal
        ctx = acc_sc[...] * inv_l                           # (H, tq, dh) f32
        n_head = ctx.shape[0]

        # Relayout once per query tile to a lane-dense (tq, H*dh) slab so the
        # output projection is a single K=D matmul (fills the 256-deep MXU).
        ctx2 = jnp.concatenate([ctx[h] for h in range(n_head)], axis=-1)

        attn = jnp.dot(ctx2.astype(wo_ref.dtype), wo_ref[...],
                       preferred_element_type=jnp.float32)
        attn = attn + bo_ref[...].astype(jnp.float32)

        x = x_ref[0].astype(jnp.float32)                    # residual path in f32
        h1 = _layer_norm_f32(attn + x,
                             g1_ref[...].astype(jnp.float32),
                             be1_ref[...].astype(jnp.float32))

        # Position-wise FFN, tiled over the same query block.
        ff = jnp.dot(h1.astype(w1_ref.dtype), w1_ref[...],
                     preferred_element_type=jnp.float32)
        ff = jnp.maximum(ff + b1_ref[...].astype(jnp.float32), 0.0)
        ff2 = jnp.dot(ff.astype(w2_ref.dtype), w2_ref[...],
                      preferred_element_type=jnp.float32)
        ff2 = ff2 + b2_ref[...].astype(jnp.float32)

        out = _layer_norm_f32(ff2 + h1,
                              g2_ref[...].astype(jnp.float32),
                              be2_ref[...].astype(jnp.float32))
        o_ref[0] = out.astype(o_ref.dtype)


# ------------------------------------ host wrapper ------------------------------------
def encoder_layer(x, src_mask, params, n_head, *,
                  q_tile=256, kv_tile=256, seq_tile=512,
                  compute_dtype=jnp.bfloat16):
    """x: (B, S, D) f32; src_mask: (B, 1, S, S) or (B, S, S)."""
    B, S, D = x.shape
    assert D % n_head == 0, "d_model must be divisible by n_head"
    H = n_head
    dh = D // H

    tq = min(q_tile, S)
    tk = min(kv_tile, S)
    ts = min(seq_tile, S)
    assert S % tq == 0 and S % tk == 0 and S % ts == 0, "seq len must divide tile sizes"

    cd = compute_dtype
    itemsize = jnp.dtype(cd).itemsize
    vmem_limit = _pick_vmem_limit_bytes()

    xb = x.astype(cd)

    # Additive attention bias (0 / -10000) in compute dtype.
    mask3 = src_mask.reshape(B, S, S)
    bias = jnp.where(mask3 == 0, jnp.float32(MASK_BIAS), jnp.float32(0.0)).astype(cd)

    # Fused QKV weight (D, 3D); matmul weights bf16 (MXU operands),
    # biases / LN affine stay f32 (f32 epilogue).
    w_qkv = jnp.concatenate([params['wq'], params['wk'], params['wv']], axis=1).astype(cd)
    b_qkv = jnp.concatenate([params['bq'], params['bk'], params['bv']], axis=1).astype(jnp.float32)
    wo = params['wo'].astype(cd)
    w1 = params['w1'].astype(cd); w2 = params['w2'].astype(cd)
    bo = params['bo'].astype(jnp.float32)
    b1 = params['b1'].astype(jnp.float32); b2 = params['b2'].astype(jnp.float32)
    g1 = params['g1'].astype(jnp.float32); be1 = params['be1'].astype(jnp.float32)
    g2 = params['g2'].astype(jnp.float32); be2 = params['be2'].astype(jnp.float32)

    # ---- pass 1: fused QKV projection, stores (B, H, S, dh) directly ----
    qkv_flops = 6 * B * S * D * D
    qkv_bytes = int(4 * B * S * D * itemsize
                    + w_qkv.size * itemsize + b_qkv.size * 4)
    head_shape = jax.ShapeDtypeStruct((B, H, S, dh), cd)
    head_out_spec = pl.BlockSpec((1, H, ts, dh), lambda b, si: (b, 0, si, 0))
    q, k, v = pl.pallas_call(
        functools.partial(_qkv_proj_kernel, n_head=H, scale=1.0 / math.sqrt(dh)),
        out_shape=[head_shape] * 3,
        grid=(B, S // ts),
        in_specs=[pl.BlockSpec((1, ts, D), lambda b, si: (b, si, 0)),
                  _const_spec(w_qkv), _const_spec(b_qkv)],
        out_specs=[head_out_spec] * 3,
        compiler_params=pltpu.CompilerParams(
            dimension_semantics=("parallel", "parallel"),
            vmem_limit_bytes=vmem_limit),
        cost_estimate=pl.CostEstimate(flops=int(qkv_flops), transcendentals=0,
                                      bytes_accessed=qkv_bytes),
    )(xb, w_qkv, b_qkv)

    # ---- pass 2: flash attention + out-proj + Add&LN + FFN + Add&LN ----
    blk_weights = [wo, bo, g1, be1, w1, b1, w2, b2, g2, be2]
    F = w1.shape[1]
    flops = B * (4 * S * S * D + 2 * S * D * D + 4 * S * D * F)
    transcend = B * H * S * S
    bytes_acc = int((xb.size + q.size + k.size + v.size + bias.size) * itemsize
                    + B * S * D * 4
                    + sum(w.size * w.dtype.itemsize for w in blk_weights))

    in_specs = [
        pl.BlockSpec((1, tq, D), lambda b, qi, ki: (b, qi, 0)),         # x (residual)
        pl.BlockSpec((1, H, tq, dh), lambda b, qi, ki: (b, 0, qi, 0)),  # q (pre-scaled)
        pl.BlockSpec((1, H, tk, dh), lambda b, qi, ki: (b, 0, ki, 0)),  # k
        pl.BlockSpec((1, H, tk, dh), lambda b, qi, ki: (b, 0, ki, 0)),  # v
        pl.BlockSpec((1, tq, tk), lambda b, qi, ki: (b, qi, ki)),       # mask bias
    ] + [_const_spec(w) for w in blk_weights]

    out = pl.pallas_call(
        _encoder_block_kernel,
        out_shape=jax.ShapeDtypeStruct((B, S, D), x.dtype),
        grid=(B, S // tq, S // tk),
        in_specs=in_specs,
        out_specs=pl.BlockSpec((1, tq, D), lambda b, qi, ki: (b, qi, 0)),
        scratch_shapes=[pltpu.VMEM((H, tq, 1), jnp.float32),   # m (running max)
                        pltpu.VMEM((H, tq, 1), jnp.float32),   # l (running denom)
                        pltpu.VMEM((H, tq, dh), jnp.float32)], # acc (running ctx)
        compiler_params=pltpu.CompilerParams(
            dimension_semantics=("parallel", "parallel", "arbitrary"),
            vmem_limit_bytes=vmem_limit),
        cost_estimate=pl.CostEstimate(flops=int(flops), transcendentals=int(transcend),
                                      bytes_accessed=bytes_acc),
    )(xb, q, k, v, bias, *blk_weights)
    return out


# ----------------------------- pure-JAX f32 reference -----------------------------
def encoder_layer_ref(x, src_mask, params, n_head):
    B, S, D = x.shape
    dh = D // n_head
    mask = src_mask.reshape(B, S, S)

    def linear(v, w, b):
        return v @ w + b

    q = linear(x, params['wq'], params['bq'])
    k = linear(x, params['wk'], params['bk'])
    v = linear(x, params['wv'], params['bv'])

    def split(t):
        return t.reshape(B, S, n_head, dh).transpose(0, 2, 1, 3)

    qh, kh, vh = split(q), split(k), split(v)
    s = jnp.einsum('bhqd,bhkd->bhqk', qh, kh) / jnp.sqrt(jnp.float32(dh))
    s = jnp.where(mask[:, None, :, :] == 0, -10000.0, s)
    p = jax.nn.softmax(s, axis=-1)
    ctx = jnp.einsum('bhqk,bhkd->bhqd', p, vh).transpose(0, 2, 1, 3).reshape(B, S, D)
    attn_out = linear(ctx, params['wo'], params['bo'])

    h1 = _layer_norm_f32(attn_out + x, params['g1'], params['be1'])
    ff = jnp.maximum(linear(h1, params['w1'], params['b1']), 0.0)
    ff = linear(ff, params['w2'], params['b2'])
    return _layer_norm_f32(ff + h1, params['g2'], params['be2'])


def make_params(key, d_model, ffn_hidden):
    ks = jax.random.split(key, 8)
    init = lambda k, shape: (0.1 * jax.random.normal(k, shape)).astype(jnp.float32)
    return {
        'wq': init(ks[0], (d_model, d_model)), 'bq': init(ks[1], (1, d_model)),
        'wk': init(ks[2], (d_model, d_model)), 'bk': init(ks[3], (1, d_model)),
        'wv': init(ks[4], (d_model, d_model)), 'bv': init(ks[5], (1, d_model)),
        'wo': init(ks[6], (d_model, d_model)), 'bo': jnp.zeros((1, d_model), jnp.float32),
        'g1': jnp.ones((1, d_model), jnp.float32), 'be1': jnp.zeros((1, d_model), jnp.float32),
        'w1': init(ks[7], (d_model, ffn_hidden)), 'b1': jnp.zeros((1, ffn_hidden), jnp.float32),
        'w2': init(jax.random.fold_in(key, 99), (ffn_hidden, d_model)),
        'b2': jnp.zeros((1, d_model), jnp.float32),
        'g2': jnp.ones((1, d_model), jnp.float32), 'be2': jnp.zeros((1, d_model), jnp.float32),
    }


if __name__ == "__main__":
    B, S, D = 2, 8, 32
    n_head, ffn_hidden = 4, 64

    key = jax.random.PRNGKey(0)
    kx, kp = jax.random.split(key)
    x = jax.random.normal(kx, (B, S, D), dtype=jnp.float32)

    # padding-style src_mask (B, 1, S, S): last two keys of batch 1 are masked out
    src_mask = jnp.ones((B, 1, S, S), dtype=jnp.float32)
    src_mask = src_mask.at[1, :, :, 6:].set(0.0)

    params = make_params(kp, D, ffn_hidden)

    enc_fn = jax.jit(functools.partial(encoder_layer, n_head=n_head))
    out = jax.block_until_ready(enc_fn(x, src_mask, params))

    ref = encoder_layer_ref(x, src_mask, params, n_head)
    assert out.shape == (B, S, D)
    max_err = float(jnp.max(jnp.abs(out - ref)))
    # bf16 MXU operands vs f32 reference -> loose tolerance.
    assert jnp.allclose(out, ref, atol=5e-2, rtol=5e-2), \
        f"mismatch vs JAX reference (max |err| = {max_err})"
    print("KERNEL_OK")
</pallas_src>

<mosaic_0001>
module attributes {stable_mosaic.version = 11 : i64} {
  func.func @_qkv_proj_kernel(%arg0: i32, %arg1: i32, %arg2: memref<1x8x32xbf16, #tpu.memory_space<vmem>>, %arg3: memref<32x96xbf16, #tpu.memory_space<vmem>>, %arg4: memref<1x96xf32, #tpu.memory_space<vmem>>, %arg5: memref<1x4x8x8xbf16, #tpu.memory_space<vmem>>, %arg6: memref<1x4x8x8xbf16, #tpu.memory_space<vmem>>, %arg7: memref<1x4x8x8xbf16, #tpu.memory_space<vmem>>) attributes {dimension_semantics = [#tpu.dimension_semantics<parallel>, #tpu.dimension_semantics<parallel>], iteration_bounds = array<i64: 2, 1>, scalar_prefetch = 0 : i64, scratch_operands = 0 : i64, tpu.core_type = #tpu.core_type<tc>, window_params = [{transform_indices = @transform_0, window_bounds = array<i64: 1, 8, 32>}, {pipeline_mode = #tpu.pipeline_mode<synchronous>, transform_indices = @transform_1, window_bounds = array<i64: 32, 96>}, {pipeline_mode = #tpu.pipeline_mode<synchronous>, transform_indices = @transform_2, window_bounds = array<i64: 1, 96>}, {transform_indices = @transform_3, window_bounds = array<i64: 1, 4, 8, 8>}, {transform_indices = @transform_4, window_bounds = array<i64: 1, 4, 8, 8>}, {transform_indices = @transform_5, window_bounds = array<i64: 1, 4, 8, 8>}]} {
    %c0 = arith.constant 0 : index
    %c0_0 = arith.constant 0 : index
    %c0_1 = arith.constant 0 : index
    %0 = vector.load %arg2[%c0, %c0_0, %c0_1] : memref<1x8x32xbf16, #tpu.memory_space<vmem>>, vector<1x8x32xbf16>
    %1 = vector.shape_cast %0 : vector<1x8x32xbf16> to vector<8x32xbf16>
    %c0_2 = arith.constant 0 : index
    %c0_3 = arith.constant 0 : index
    %2 = vector.load %arg3[%c0_2, %c0_3] : memref<32x96xbf16, #tpu.memory_space<vmem>>, vector<32x96xbf16>
    %cst = arith.constant dense<0.000000e+00> : vector<8x96xf32>
    %3 = tpu.matmul %1, %2, %cst {dimension_numbers = #tpu.dot_dimension_numbers<[1], [0], [0], [1], [0, 0, 1, 1], [], []>} : vector<8x32xbf16>, vector<32x96xbf16>, vector<8x96xf32> -> vector<8x96xf32>
    %c0_4 = arith.constant 0 : index
    %c0_5 = arith.constant 0 : index
    %4 = vector.load %arg4[%c0_4, %c0_5] : memref<1x96xf32, #tpu.memory_space<vmem>>, vector<1x96xf32>
    %5 = vector.broadcast %4 : vector<1x96xf32> to vector<8x96xf32>
    %6 = arith.addf %3, %5 : vector<8x96xf32>
    %7 = vector.extract_strided_slice %6 {offsets = [0, 0], sizes = [8, 8], strides = [1, 1]} : vector<8x96xf32> to vector<8x8xf32>
    %cst_6 = arith.constant 0.353553385 : f32
    %8 = vector.broadcast %cst_6 : f32 to vector<8x8xf32>
    %9 = arith.mulf %7, %8 : vector<8x8xf32>
    %10 = arith.truncf %9 : vector<8x8xf32> to vector<8x8xbf16>
    %c0_7 = arith.constant 0 : index
    %c0_8 = arith.constant 0 : index
    %c0_9 = arith.constant 0 : index
    %c0_10 = arith.constant 0 : index
    %11 = vector.load %arg5[%c0_7, %c0_8, %c0_9, %c0_10] : memref<1x4x8x8xbf16, #tpu.memory_space<vmem>>, vector<1x1x8x8xbf16>
    %12 = vector.shape_cast %11 : vector<1x1x8x8xbf16> to vector<8x8xbf16>
    %13 = vector.shape_cast %10 : vector<8x8xbf16> to vector<1x1x8x8xbf16>
    tpu.vector_store %arg5[%c0_7, %c0_8, %c0_9, %c0_10], %13 {strides = array<i32>} : memref<1x4x8x8xbf16, #tpu.memory_space<vmem>>, vector<1x1x8x8xbf16>,
    %14 = vector.extract_strided_slice %6 {offsets = [0, 32], sizes = [8, 8], strides = [1, 1]} : vector<8x96xf32> to vector<8x8xf32>
    %15 = arith.truncf %14 : vector<8x8xf32> to vector<8x8xbf16>
    %c0_11 = arith.constant 0 : index
    %c0_12 = arith.constant 0 : index
    %c0_13 = arith.constant 0 : index
    %c0_14 = arith.constant 0 : index
    %16 = vector.load %arg6[%c0_11, %c0_12, %c0_13, %c0_14] : memref<1x4x8x8xbf16, #tpu.memory_space<vmem>>, vector<1x1x8x8xbf16>
    %17 = vector.shape_cast %16 : vector<1x1x8x8xbf16> to vector<8x8xbf16>
    %18 = vector.shape_cast %15 : vector<8x8xbf16> to vector<1x1x8x8xbf16>
    tpu.vector_store %arg6[%c0_11, %c0_12, %c0_13, %c0_14], %18 {strides = array<i32>} : memref<1x4x8x8xbf16, #tpu.memory_space<vmem>>, vector<1x1x8x8xbf16>,
    %19 = vector.extract_strided_slice %6 {offsets = [0, 64], sizes = [8, 8], strides = [1, 1]} : vector<8x96xf32> to vector<8x8xf32>
    %20 = arith.truncf %19 : vector<8x8xf32> to vector<8x8xbf16>
    %c0_15 = arith.constant 0 : index
    %c0_16 = arith.constant 0 : index
    %c0_17 = arith.constant 0 : index
    %c0_18 = arith.constant 0 : index
    %21 = vector.load %arg7[%c0_15, %c0_16, %c0_17, %c0_18] : memref<1x4x8x8xbf16, #tpu.memory_space<vmem>>, vector<1x1x8x8xbf16>
    %22 = vector.shape_cast %21 : vector<1x1x8x8xbf16> to vector<8x8xbf16>
    %23 = vector.shape_cast %20 : vector<8x8xbf16> to vector<1x1x8x8xbf16>
    tpu.vector_store %arg7[%c0_15, %c0_16, %c0_17, %c0_18], %23 {strides = array<i32>} : memref<1x4x8x8xbf16, #tpu.memory_space<vmem>>, vector<1x1x8x8xbf16>,
    %24 = vector.extract_strided_slice %6 {offsets = [0, 8], sizes = [8, 8], strides = [1, 1]} : vector<8x96xf32> to vector<8x8xf32>
    %cst_19 = arith.constant 0.353553385 : f32
    %25 = vector.broadcast %cst_19 : f32 to vector<8x8xf32>
    %26 = arith.mulf %24, %25 : vector<8x8xf32>
    %27 = arith.truncf %26 : vector<8x8xf32> to vector<8x8xbf16>
    %c0_20 = arith.constant 0 : index
    %c1 = arith.constant 1 : index
    %c0_21 = arith.constant 0 : index
    %c0_22 = arith.constant 0 : index
    %28 = vector.load %arg5[%c0_20, %c1, %c0_21, %c0_22] : memref<1x4x8x8xbf16, #tpu.memory_space<vmem>>, vector<1x1x8x8xbf16>
    %29 = vector.shape_cast %28 : vector<1x1x8x8xbf16> to vector<8x8xbf16>
    %30 = vector.shape_cast %27 : vector<8x8xbf16> to vector<1x1x8x8xbf16>
    tpu.vector_store %arg5[%c0_20, %c1, %c0_21, %c0_22], %30 {strides = array<i32>} : memref<1x4x8x8xbf16, #tpu.memory_space<vmem>>, vector<1x1x8x8xbf16>,
    %31 = vector.extract_strided_slice %6 {offsets = [0, 40], sizes = [8, 8], strides = [1, 1]} : vector<8x96xf32> to vector<8x8xf32>
    %32 = arith.truncf %31 : vector<8x8xf32> to vector<8x8xbf16>
    %c0_23 = arith.constant 0 : index
    %c1_24 = arith.constant 1 : index
    %c0_25 = arith.constant 0 : index
    %c0_26 = arith.constant 0 : index
    %33 = vector.load %arg6[%c0_23, %c1_24, %c0_25, %c0_26] : memref<1x4x8x8xbf16, #tpu.memory_space<vmem>>, vector<1x1x8x8xbf16>
    %34 = vector.shape_cast %33 : vector<1x1x8x8xbf16> to vector<8x8xbf16>
    %35 = vector.shape_cast %32 : vector<8x8xbf16> to vector<1x1x8x8xbf16>
    tpu.vector_store %arg6[%c0_23, %c1_24, %c0_25, %c0_26], %35 {strides = array<i32>} : memref<1x4x8x8xbf16, #tpu.memory_space<vmem>>, vector<1x1x8x8xbf16>,
    %36 = vector.extract_strided_slice %6 {offsets = [0, 72], sizes = [8, 8], strides = [1, 1]} : vector<8x96xf32> to vector<8x8xf32>
    %37 = arith.truncf %36 : vector<8x8xf32> to vector<8x8xbf16>
    %c0_27 = arith.constant 0 : index
    %c1_28 = arith.constant 1 : index
    %c0_29 = arith.constant 0 : index
    %c0_30 = arith.constant 0 : index
    %38 = vector.load %arg7[%c0_27, %c1_28, %c0_29, %c0_30] : memref<1x4x8x8xbf16, #tpu.memory_space<vmem>>, vector<1x1x8x8xbf16>
    %39 = vector.shape_cast %38 : vector<1x1x8x8xbf16> to vector<8x8xbf16>
    %40 = vector.shape_cast %37 : vector<8x8xbf16> to vector<1x1x8x8xbf16>
    tpu.vector_store %arg7[%c0_27, %c1_28, %c0_29, %c0_30], %40 {strides = array<i32>} : memref<1x4x8x8xbf16, #tpu.memory_space<vmem>>, vector<1x1x8x8xbf16>,
    %41 = vector.extract_strided_slice %6 {offsets = [0, 16], sizes = [8, 8], strides = [1, 1]} : vector<8x96xf32> to vector<8x8xf32>
    %cst_31 = arith.constant 0.353553385 : f32
    %42 = vector.broadcast %cst_31 : f32 to vector<8x8xf32>
    %43 = arith.mulf %41, %42 : vector<8x8xf32>
    %44 = arith.truncf %43 : vector<8x8xf32> to vector<8x8xbf16>
    %c0_32 = arith.constant 0 : index
    %c2 = arith.constant 2 : index
    %c0_33 = arith.constant 0 : index
    %c0_34 = arith.constant 0 : index
    %45 = vector.load %arg5[%c0_32, %c2, %c0_33, %c0_34] : memref<1x4x8x8xbf16, #tpu.memory_space<vmem>>, vector<1x1x8x8xbf16>
    %46 = vector.shape_cast %45 : vector<1x1x8x8xbf16> to vector<8x8xbf16>
    %47 = vector.shape_cast %44 : vector<8x8xbf16> to vector<1x1x8x8xbf16>
    tpu.vector_store %arg5[%c0_32, %c2, %c0_33, %c0_34], %47 {strides = array<i32>} : memref<1x4x8x8xbf16, #tpu.memory_space<vmem>>, vector<1x1x8x8xbf16>,
    %48 = vector.extract_strided_slice %6 {offsets = [0, 48], sizes = [8, 8], strides = [1, 1]} : vector<8x96xf32> to vector<8x8xf32>
    %49 = arith.truncf %48 : vector<8x8xf32> to vector<8x8xbf16>
    %c0_35 = arith.constant 0 : index
    %c2_36 = arith.constant 2 : index
    %c0_37 = arith.constant 0 : index
    %c0_38 = arith.constant 0 : index
    %50 = vector.load %arg6[%c0_35, %c2_36, %c0_37, %c0_38] : memref<1x4x8x8xbf16, #tpu.memory_space<vmem>>, vector<1x1x8x8xbf16>
    %51 = vector.shape_cast %50 : vector<1x1x8x8xbf16> to vector<8x8xbf16>
    %52 = vector.shape_cast %49 : vector<8x8xbf16> to vector<1x1x8x8xbf16>
    tpu.vector_store %arg6[%c0_35, %c2_36, %c0_37, %c0_38], %52 {strides = array<i32>} : memref<1x4x8x8xbf16, #tpu.memory_space<vmem>>, vector<1x1x8x8xbf16>,
    %53 = vector.extract_strided_slice %6 {offsets = [0, 80], sizes = [8, 8], strides = [1, 1]} : vector<8x96xf32> to vector<8x8xf32>
    %54 = arith.truncf %53 : vector<8x8xf32> to vector<8x8xbf16>
    %c0_39 = arith.constant 0 : index
    %c2_40 = arith.constant 2 : index
    %c0_41 = arith.constant 0 : index
    %c0_42 = arith.constant 0 : index
    %55 = vector.load %arg7[%c0_39, %c2_40, %c0_41, %c0_42] : memref<1x4x8x8xbf16, #tpu.memory_space<vmem>>, vector<1x1x8x8xbf16>
    %56 = vector.shape_cast %55 : vector<1x1x8x8xbf16> to vector<8x8xbf16>
    %57 = vector.shape_cast %54 : vector<8x8xbf16> to vector<1x1x8x8xbf16>
    tpu.vector_store %arg7[%c0_39, %c2_40, %c0_41, %c0_42], %57 {strides = array<i32>} : memref<1x4x8x8xbf16, #tpu.memory_space<vmem>>, vector<1x1x8x8xbf16>,
    %58 = vector.extract_strided_slice %6 {offsets = [0, 24], sizes = [8, 8], strides = [1, 1]} : vector<8x96xf32> to vector<8x8xf32>
    %cst_43 = arith.constant 0.353553385 : f32
    %59 = vector.broadcast %cst_43 : f32 to vector<8x8xf32>
    %60 = arith.mulf %58, %59 : vector<8x8xf32>
    %61 = arith.truncf %60 : vector<8x8xf32> to vector<8x8xbf16>
    %c0_44 = arith.constant 0 : index
    %c3 = arith.constant 3 : index
    %c0_45 = arith.constant 0 : index
    %c0_46 = arith.constant 0 : index
    %62 = vector.load %arg5[%c0_44, %c3, %c0_45, %c0_46] : memref<1x4x8x8xbf16, #tpu.memory_space<vmem>>, vector<1x1x8x8xbf16>
    %63 = vector.shape_cast %62 : vector<1x1x8x8xbf16> to vector<8x8xbf16>
    %64 = vector.shape_cast %61 : vector<8x8xbf16> to vector<1x1x8x8xbf16>
    tpu.vector_store %arg5[%c0_44, %c3, %c0_45, %c0_46], %64 {strides = array<i32>} : memref<1x4x8x8xbf16, #tpu.memory_space<vmem>>, vector<1x1x8x8xbf16>,
    %65 = vector.extract_strided_slice %6 {offsets = [0, 56], sizes = [8, 8], strides = [1, 1]} : vector<8x96xf32> to vector<8x8xf32>
    %66 = arith.truncf %65 : vector<8x8xf32> to vector<8x8xbf16>
    %c0_47 = arith.constant 0 : index
    %c3_48 = arith.constant 3 : index
    %c0_49 = arith.constant 0 : index
    %c0_50 = arith.constant 0 : index
    %67 = vector.load %arg6[%c0_47, %c3_48, %c0_49, %c0_50] : memref<1x4x8x8xbf16, #tpu.memory_space<vmem>>, vector<1x1x8x8xbf16>
    %68 = vector.shape_cast %67 : vector<1x1x8x8xbf16> to vector<8x8xbf16>
    %69 = vector.shape_cast %66 : vector<8x8xbf16> to vector<1x1x8x8xbf16>
    tpu.vector_store %arg6[%c0_47, %c3_48, %c0_49, %c0_50], %69 {strides = array<i32>} : memref<1x4x8x8xbf16, #tpu.memory_space<vmem>>, vector<1x1x8x8xbf16>,
    %70 = vector.extract_strided_slice %6 {offsets = [0, 88], sizes = [8, 8], strides = [1, 1]} : vector<8x96xf32> to vector<8x8xf32>
    %71 = arith.truncf %70 : vector<8x8xf32> to vector<8x8xbf16>
    %c0_51 = arith.constant 0 : index
    %c3_52 = arith.constant 3 : index
    %c0_53 = arith.constant 0 : index
    %c0_54 = arith.constant 0 : index
    %72 = vector.load %arg7[%c0_51, %c3_52, %c0_53, %c0_54] : memref<1x4x8x8xbf16, #tpu.memory_space<vmem>>, vector<1x1x8x8xbf16>
    %73 = vector.shape_cast %72 : vector<1x1x8x8xbf16> to vector<8x8xbf16>
    %74 = vector.shape_cast %71 : vector<8x8xbf16> to vector<1x1x8x8xbf16>
    tpu.vector_store %arg7[%c0_51, %c3_52, %c0_53, %c0_54], %74 {strides = array<i32>} : memref<1x4x8x8xbf16, #tpu.memory_space<vmem>>, vector<1x1x8x8xbf16>,
    return
  }
  func.func @transform_0(%arg0: i32, %arg1: i32) -> (i32, i32, i32) {
    %c0_i32 = arith.constant 0 : i32
    %c0_i32_0 = arith.constant 0 : i32
    return %arg0, %arg1, %c0_i32 : i32, i32, i32
  }
  func.func @transform_1(%arg0: i32, %arg1: i32) -> (i32, i32) {
    %c0_i32 = arith.constant 0 : i32
    %c0_i32_0 = arith.constant 0 : i32
    %c0_i32_1 = arith.constant 0 : i32
    return %c0_i32, %c0_i32_0 : i32, i32
  }
  func.func @transform_2(%arg0: i32, %arg1: i32) -> (i32, i32) {
    %c0_i32 = arith.constant 0 : i32
    %c0_i32_0 = arith.constant 0 : i32
    %c0_i32_1 = arith.constant 0 : i32
    return %c0_i32, %c0_i32_0 : i32, i32
  }
  func.func @transform_3(%arg0: i32, %arg1: i32) -> (i32, i32, i32, i32) {
    %c0_i32 = arith.constant 0 : i32
    %c0_i32_0 = arith.constant 0 : i32
    %c0_i32_1 = arith.constant 0 : i32
    return %arg0, %c0_i32, %arg1, %c0_i32_0 : i32, i32, i32, i32
  }
  func.func @transform_4(%arg0: i32, %arg1: i32) -> (i32, i32, i32, i32) {
    %c0_i32 = arith.constant 0 : i32
    %c0_i32_0 = arith.constant 0 : i32
    %c0_i32_1 = arith.constant 0 : i32
    return %arg0, %c0_i32, %arg1, %c0_i32_0 : i32, i32, i32, i32
  }
  func.func @transform_5(%arg0: i32, %arg1: i32) -> (i32, i32, i32, i32) {
    %c0_i32 = arith.constant 0 : i32
    %c0_i32_0 = arith.constant 0 : i32
    %c0_i32_1 = arith.constant 0 : i32
    return %arg0, %c0_i32, %arg1, %c0_i32_0 : i32, i32, i32, i32
  }
}

module attributes {stable_mosaic.version = 11 : i64} {
  func.func @_encoder_block_kernel(%arg0: i32, %arg1: i32, %arg2: i32, %arg3: memref<1x8x32xbf16, #tpu.memory_space<vmem>>, %arg4: memref<1x4x8x8xbf16, #tpu.memory_space<vmem>>, %arg5: memref<1x4x8x8xbf16, #tpu.memory_space<vmem>>, %arg6: memref<1x4x8x8xbf16, #tpu.memory_space<vmem>>, %arg7: memref<1x8x8xbf16, #tpu.memory_space<vmem>>, %arg8: memref<32x32xbf16, #tpu.memory_space<vmem>>, %arg9: memref<1x32xf32, #tpu.memory_space<vmem>>, %arg10: memref<1x32xf32, #tpu.memory_space<vmem>>, %arg11: memref<1x32xf32, #tpu.memory_space<vmem>>, %arg12: memref<32x64xbf16, #tpu.memory_space<vmem>>, %arg13: memref<1x64xf32, #tpu.memory_space<vmem>>, %arg14: memref<64x32xbf16, #tpu.memory_space<vmem>>, %arg15: memref<1x32xf32, #tpu.memory_space<vmem>>, %arg16: memref<1x32xf32, #tpu.memory_space<vmem>>, %arg17: memref<1x32xf32, #tpu.memory_space<vmem>>, %arg18: memref<1x8x32xf32, #tpu.memory_space<vmem>>, %arg19: memref<4x8x1xf32, #tpu.memory_space<vmem>>, %arg20: memref<4x8x1xf32, #tpu.memory_space<vmem>>, %arg21: memref<4x8x8xf32, #tpu.memory_space<vmem>>) attributes {dimension_semantics = [#tpu.dimension_semantics<parallel>, #tpu.dimension_semantics<parallel>, #tpu.dimension_semantics<arbitrary>], iteration_bounds = array<i64: 2, 1, 1>, scalar_prefetch = 0 : i64, scratch_operands = 3 : i64, tpu.core_type = #tpu.core_type<tc>, window_params = [{transform_indices = @transform_0, window_bounds = array<i64: 1, 8, 32>}, {transform_indices = @transform_1, window_bounds = array<i64: 1, 4, 8, 8>}, {transform_indices = @transform_2, window_bounds = array<i64: 1, 4, 8, 8>}, {transform_indices = @transform_3, window_bounds = array<i64: 1, 4, 8, 8>}, {transform_indices = @transform_4, window_bounds = array<i64: 1, 8, 8>}, {pipeline_mode = #tpu.pipeline_mode<synchronous>, transform_indices = @transform_5, window_bounds = array<i64: 32, 32>}, {pipeline_mode = #tpu.pipeline_mode<synchronous>, transform_indices = @transform_6, window_bounds = array<i64: 1, 32>}, {pipeline_mode = #tpu.pipeline_mode<synchronous>, transform_indices = @transform_7, window_bounds = array<i64: 1, 32>}, {pipeline_mode = #tpu.pipeline_mode<synchronous>, transform_indices = @transform_8, window_bounds = array<i64: 1, 32>}, {pipeline_mode = #tpu.pipeline_mode<synchronous>, transform_indices = @transform_9, window_bounds = array<i64: 32, 64>}, {pipeline_mode = #tpu.pipeline_mode<synchronous>, transform_indices = @transform_10, window_bounds = array<i64: 1, 64>}, {pipeline_mode = #tpu.pipeline_mode<synchronous>, transform_indices = @transform_11, window_bounds = array<i64: 64, 32>}, {pipeline_mode = #tpu.pipeline_mode<synchronous>, transform_indices = @transform_12, window_bounds = array<i64: 1, 32>}, {pipeline_mode = #tpu.pipeline_mode<synchronous>, transform_indices = @transform_13, window_bounds = array<i64: 1, 32>}, {pipeline_mode = #tpu.pipeline_mode<synchronous>, transform_indices = @transform_14, window_bounds = array<i64: 1, 32>}, {transform_indices = @transform_15, window_bounds = array<i64: 1, 8, 32>}]} {
    %c0_i32 = arith.constant 0 : i32
    %0 = arith.cmpi eq, %arg2, %c0_i32 : i32
    %1 = arith.extui %0 : i1 to i32
    %c0_i32_0 = arith.constant 0 : i32
    %2 = arith.cmpi ne, %1, %c0_i32_0 : i32
    scf.if %2 {
      %cst_38 = arith.constant -1.000000e+30 : f32
      %42 = vector.broadcast %cst_38 : f32 to vector<4x8x1xf32>
      %c0_39 = arith.constant 0 : index
      %c0_40 = arith.constant 0 : index
      %c0_41 = arith.constant 0 : index
      %43 = vector.load %arg19[%c0_39, %c0_40, %c0_41] : memref<4x8x1xf32, #tpu.memory_space<vmem>>, vector<4x8x1xf32>
      tpu.vector_store %arg19[%c0_39, %c0_40, %c0_41], %42 {strides = array<i32>} : memref<4x8x1xf32, #tpu.memory_space<vmem>>, vector<4x8x1xf32>,
      %cst_42 = arith.constant 0.000000e+00 : f32
      %44 = vector.broadcast %cst_42 : f32 to vector<4x8x1xf32>
      %c0_43 = arith.constant 0 : index
      %c0_44 = arith.constant 0 : index
      %c0_45 = arith.constant 0 : index
      %45 = vector.load %arg20[%c0_43, %c0_44, %c0_45] : memref<4x8x1xf32, #tpu.memory_space<vmem>>, vector<4x8x1xf32>
      tpu.vector_store %arg20[%c0_43, %c0_44, %c0_45], %44 {strides = array<i32>} : memref<4x8x1xf32, #tpu.memory_space<vmem>>, vector<4x8x1xf32>,
      %cst_46 = arith.constant 0.000000e+00 : f32
      %46 = vector.broadcast %cst_46 : f32 to vector<4x8x8xf32>
      %c0_47 = arith.constant 0 : index
      %c0_48 = arith.constant 0 : index
      %c0_49 = arith.constant 0 : index
      %47 = vector.load %arg21[%c0_47, %c0_48, %c0_49] : memref<4x8x8xf32, #tpu.memory_space<vmem>>, vector<4x8x8xf32>
      tpu.vector_store %arg21[%c0_47, %c0_48, %c0_49], %46 {strides = array<i32>} : memref<4x8x8xf32, #tpu.memory_space<vmem>>, vector<4x8x8xf32>,
    } else {
    }
    %c0 = arith.constant 0 : index
    %c0_1 = arith.constant 0 : index
    %c0_2 = arith.constant 0 : index
    %c0_3 = arith.constant 0 : index
    %3 = vector.load %arg4[%c0, %c0_1, %c0_2, %c0_3] : memref<1x4x8x8xbf16, #tpu.memory_space<vmem>>, vector<1x4x8x8xbf16>
    %4 = vector.shape_cast %3 : vector<1x4x8x8xbf16> to vector<4x8x8xbf16>
    %c0_4 = arith.constant 0 : index
    %c0_5 = arith.constant 0 : index
    %c0_6 = arith.constant 0 : index
    %c0_7 = arith.constant 0 : index
    %5 = vector.load %arg5[%c0_4, %c0_5, %c0_6, %c0_7] : memref<1x4x8x8xbf16, #tpu.memory_space<vmem>>, vector<1x4x8x8xbf16>
    %6 = vector.shape_cast %5 : vector<1x4x8x8xbf16> to vector<4x8x8xbf16>
    %c0_8 = arith.constant 0 : index
    %c0_9 = arith.constant 0 : index
    %c0_10 = arith.constant 0 : index
    %c0_11 = arith.constant 0 : index
    %7 = vector.load %arg6[%c0_8, %c0_9, %c0_10, %c0_11] : memref<1x4x8x8xbf16, #tpu.memory_space<vmem>>, vector<1x4x8x8xbf16>
    %8 = vector.shape_cast %7 : vector<1x4x8x8xbf16> to vector<4x8x8xbf16>
    "tpu.trace_start"() <{level = 10 : i32, message = "hqd,hkd->hqk"}> : () -> ()
    %cst = arith.constant dense<0.000000e+00> : vector<4x8x8xf32>
    %9 = tpu.matmul %4, %6, %cst {dimension_numbers = #tpu.dot_dimension_numbers<[2], [2], [1], [1], [0, 0, 0, 1, 1, 1], [0], [0]>} : vector<4x8x8xbf16>, vector<4x8x8xbf16>, vector<4x8x8xf32> -> vector<4x8x8xf32>
    "tpu.trace_stop"() : () -> ()
    %c0_12 = arith.constant 0 : index
    %c0_13 = arith.constant 0 : index
    %c0_14 = arith.constant 0 : index
    %10 = vector.load %arg7[%c0_12, %c0_13, %c0_14] : memref<1x8x8xbf16, #tpu.memory_space<vmem>>, vector<1x8x8xbf16>
    %11 = vector.shape_cast %10 : vector<1x8x8xbf16> to vector<8x8xbf16>
    %12 = arith.extf %11 : vector<8x8xbf16> to vector<8x8xf32>
    %13 = vector.shape_cast %12 : vector<8x8xf32> to vector<1x8x8xf32>
    %14 = vector.broadcast %13 : vector<1x8x8xf32> to vector<4x8x8xf32>
    %15 = arith.addf %9, %14 : vector<4x8x8xf32>
    %c0_15 = arith.constant 0 : index
    %c0_16 = arith.constant 0 : index
    %c0_17 = arith.constant 0 : index
    %16 = vector.load %arg19[%c0_15, %c0_16, %c0_17] : memref<4x8x1xf32, #tpu.memory_space<vmem>>, vector<4x8x1xf32>
    %cst_18 = arith.constant dense<0xFF800000> : vector<4x8xf32>
    %17 = vector.multi_reduction <maximumf>, %15, %cst_18 [2] : vector<4x8x8xf32> to vector<4x8xf32>
    %18 = vector.shape_cast %17 : vector<4x8xf32> to vector<4x8x1xf32>
    %19 = arith.maximumf %16, %18 : vector<4x8x1xf32>
    %20 = arith.subf %16, %19 : vector<4x8x1xf32>
    %21 = math.exp %20 : vector<4x8x1xf32>
    %22 = vector.broadcast %19 : vector<4x8x1xf32> to vector<4x8x8xf32>
    %23 = arith.subf %15, %22 : vector<4x8x8xf32>
    %24 = math.exp %23 : vector<4x8x8xf32>
    %c0_19 = arith.constant 0 : index
    %c0_20 = arith.constant 0 : index
    %c0_21 = arith.constant 0 : index
    %25 = vector.load %arg20[%c0_19, %c0_20, %c0_21] : memref<4x8x1xf32, #tpu.memory_space<vmem>>, vector<4x8x1xf32>
    %26 = arith.mulf %21, %25 : vector<4x8x1xf32>
    %cst_22 = arith.constant dense<0.000000e+00> : vector<4x8xf32>
    %27 = vector.multi_reduction <add>, %24, %cst_22 [2] : vector<4x8x8xf32> to vector<4x8xf32>
    %28 = vector.shape_cast %27 : vector<4x8xf32> to vector<4x8x1xf32>
    %29 = arith.addf %26, %28 : vector<4x8x1xf32>
    %c0_23 = arith.constant 0 : index
    %c0_24 = arith.constant 0 : index
    %c0_25 = arith.constant 0 : index
    %30 = vector.load %arg20[%c0_23, %c0_24, %c0_25] : memref<4x8x1xf32, #tpu.memory_space<vmem>>, vector<4x8x1xf32>
    tpu.vector_store %arg20[%c0_23, %c0_24, %c0_25], %29 {strides = array<i32>} : memref<4x8x1xf32, #tpu.memory_space<vmem>>, vector<4x8x1xf32>,
    %c0_26 = arith.constant 0 : index
    %c0_27 = arith.constant 0 : index
    %c0_28 = arith.constant 0 : index
    %31 = vector.load %arg21[%c0_26, %c0_27, %c0_28] : memref<4x8x8xf32, #tpu.memory_space<vmem>>, vector<4x8x8xf32>
    %32 = vector.broadcast %21 : vector<4x8x1xf32> to vector<4x8x8xf32>
    %33 = arith.mulf %32, %31 : vector<4x8x8xf32>
    %34 = arith.truncf %24 : vector<4x8x8xf32> to vector<4x8x8xbf16>
    "tpu.trace_start"() <{level = 10 : i32, message = "hqk,hkd->hqd"}> : () -> ()
    %cst_29 = arith.constant dense<0.000000e+00> : vector<4x8x8xf32>
    %35 = tpu.matmul %34, %8, %cst_29 {dimension_numbers = #tpu.dot_dimension_numbers<[2], [1], [1], [2], [0, 0, 0, 1, 1, 2], [0], [0]>} : vector<4x8x8xbf16>, vector<4x8x8xbf16>, vector<4x8x8xf32> -> vector<4x8x8xf32>
    "tpu.trace_stop"() : () -> ()
    %36 = arith.addf %33, %35 : vector<4x8x8xf32>
    %c0_30 = arith.constant 0 : index
    %c0_31 = arith.constant 0 : index
    %c0_32 = arith.constant 0 : index
    %37 = vector.load %arg21[%c0_30, %c0_31, %c0_32] : memref<4x8x8xf32, #tpu.memory_space<vmem>>, vector<4x8x8xf32>
    tpu.vector_store %arg21[%c0_30, %c0_31, %c0_32], %36 {strides = array<i32>} : memref<4x8x8xf32, #tpu.memory_space<vmem>>, vector<4x8x8xf32>,
    %c0_33 = arith.constant 0 : index
    %c0_34 = arith.constant 0 : index
    %c0_35 = arith.constant 0 : index
    %38 = vector.load %arg19[%c0_33, %c0_34, %c0_35] : memref<4x8x1xf32, #tpu.memory_space<vmem>>, vector<4x8x1xf32>
    tpu.vector_store %arg19[%c0_33, %c0_34, %c0_35], %19 {strides = array<i32>} : memref<4x8x1xf32, #tpu.memory_space<vmem>>, vector<4x8x1xf32>,
    %c0_i32_36 = arith.constant 0 : i32
    %39 = arith.cmpi eq, %arg2, %c0_i32_36 : i32
    %40 = arith.extui %39 : i1 to i32
    %c0_i32_37 = arith.constant 0 : i32
    %41 = arith.cmpi ne, %40, %c0_i32_37 : i32
    scf.if %41 {
      %c0_38 = arith.constant 0 : index
      %c0_39 = arith.constant 0 : index
      %c0_40 = arith.constant 0 : index
      %42 = vector.load %arg20[%c0_38, %c0_39, %c0_40] : memref<4x8x1xf32, #tpu.memory_space<vmem>>, vector<4x8x1xf32>
      %43 = tpu.reciprocal %42 {approx = true} : vector<4x8x1xf32> -> vector<4x8x1xf32>
      %c0_41 = arith.constant 0 : index
      %c0_42 = arith.constant 0 : index
      %c0_43 = arith.constant 0 : index
      %44 = vector.load %arg21[%c0_41, %c0_42, %c0_43] : memref<4x8x8xf32, #tpu.memory_space<vmem>>, vector<4x8x8xf32>
      %45 = vector.broadcast %43 : vector<4x8x1xf32> to vector<4x8x8xf32>
      %46 = arith.mulf %44, %45 : vector<4x8x8xf32>
      %47 = vector.extract_strided_slice %46 {offsets = [0, 0, 0], sizes = [1, 8, 8], strides = [1, 1, 1]} : vector<4x8x8xf32> to vector<1x8x8xf32>
      %48 = vector.shape_cast %47 : vector<1x8x8xf32> to vector<8x8xf32>
      %49 = vector.extract_strided_slice %46 {offsets = [1, 0, 0], sizes = [1, 8, 8], strides = [1, 1, 1]} : vector<4x8x8xf32> to vector<1x8x8xf32>
      %50 = vector.shape_cast %49 : vector<1x8x8xf32> to vector<8x8xf32>
      %51 = vector.extract_strided_slice %46 {offsets = [2, 0, 0], sizes = [1, 8, 8], strides = [1, 1, 1]} : vector<4x8x8xf32> to vector<1x8x8xf32>
      %52 = vector.shape_cast %51 : vector<1x8x8xf32> to vector<8x8xf32>
      %53 = vector.extract_strided_slice %46 {offsets = [3, 0, 0], sizes = [1, 8, 8], strides = [1, 1, 1]} : vector<4x8x8xf32> to vector<1x8x8xf32>
      %54 = vector.shape_cast %53 : vector<1x8x8xf32> to vector<8x8xf32>
      %55 = tpu.concatenate %48, %50, %52, %54 in 1 : vector<8x8xf32>, vector<8x8xf32>, vector<8x8xf32>, vector<8x8xf32> -> vector<8x32xf32>
      %56 = arith.truncf %55 : vector<8x32xf32> to vector<8x32xbf16>
      %c0_44 = arith.constant 0 : index
      %c0_45 = arith.constant 0 : index
      %57 = vector.load %arg8[%c0_44, %c0_45] : memref<32x32xbf16, #tpu.memory_space<vmem>>, vector<32x32xbf16>
      %cst_46 = arith.constant dense<0.000000e+00> : vector<8x32xf32>
      %58 = tpu.matmul %56, %57, %cst_46 {dimension_numbers = #tpu.dot_dimension_numbers<[1], [0], [0], [1], [0, 0, 1, 1], [], []>} : vector<8x32xbf16>, vector<32x32xbf16>, vector<8x32xf32> -> vector<8x32xf32>
      %c0_47 = arith.constant 0 : index
      %c0_48 = arith.constant 0 : index
      %59 = vector.load %arg9[%c0_47, %c0_48] : memref<1x32xf32, #tpu.memory_space<vmem>>, vector<1x32xf32>
      %60 = vector.broadcast %59 : vector<1x32xf32> to vector<8x32xf32>
      %61 = arith.addf %58, %60 : vector<8x32xf32>
      %c0_49 = arith.constant 0 : index
      %c0_50 = arith.constant 0 : index
      %c0_51 = arith.constant 0 : index
      %62 = vector.load %arg3[%c0_49, %c0_50, %c0_51] : memref<1x8x32xbf16, #tpu.memory_space<vmem>>, vector<1x8x32xbf16>
      %63 = vector.shape_cast %62 : vector<1x8x32xbf16> to vector<8x32xbf16>
      %64 = arith.extf %63 : vector<8x32xbf16> to vector<8x32xf32>
      %65 = arith.addf %61, %64 : vector<8x32xf32>
      %c0_52 = arith.constant 0 : index
      %c0_53 = arith.constant 0 : index
      %66 = vector.load %arg10[%c0_52, %c0_53] : memref<1x32xf32, #tpu.memory_space<vmem>>, vector<1x32xf32>
      %c0_54 = arith.constant 0 : index
      %c0_55 = arith.constant 0 : index
      %67 = vector.load %arg11[%c0_54, %c0_55] : memref<1x32xf32, #tpu.memory_space<vmem>>, vector<1x32xf32>
      %cst_56 = arith.constant dense<0.000000e+00> : vector<8xf32>
      %68 = vector.multi_reduction <add>, %65, %cst_56 [1] : vector<8x32xf32> to vector<8xf32>
      %69 = vector.shape_cast %68 : vector<8xf32> to vector<8x1xf32>
      %cst_57 = arith.constant 3.200000e+01 : f32
      %70 = vector.broadcast %cst_57 : f32 to vector<8x1xf32>
      %71 = arith.divf %69, %70 : vector<8x1xf32>
      %72 = vector.broadcast %71 : vector<8x1xf32> to vector<8x32xf32>
      %73 = arith.subf %65, %72 : vector<8x32xf32>
      %74 = arith.mulf %73, %73 : vector<8x32xf32>
      %cst_58 = arith.constant dense<0.000000e+00> : vector<8xf32>
      %75 = vector.multi_reduction <add>, %74, %cst_58 [1] : vector<8x32xf32> to vector<8xf32>
      %76 = vector.shape_cast %75 : vector<8xf32> to vector<8x1xf32>
      %cst_59 = arith.constant 3.200000e+01 : f32
      %77 = vector.broadcast %cst_59 : f32 to vector<8x1xf32>
      %78 = arith.divf %76, %77 : vector<8x1xf32>
      %79 = vector.broadcast %66 : vector<1x32xf32> to vector<8x32xf32>
      %80 = arith.mulf %79, %73 : vector<8x32xf32>
      %cst_60 = arith.constant 9.99999996E-13 : f32
      %81 = vector.broadcast %cst_60 : f32 to vector<8x1xf32>
      %82 = arith.addf %78, %81 : vector<8x1xf32>
      %83 = math.rsqrt %82 : vector<8x1xf32>
      %84 = vector.broadcast %83 : vector<8x1xf32> to vector<8x32xf32>
      %85 = arith.mulf %80, %84 : vector<8x32xf32>
      %86 = vector.broadcast %67 : vector<1x32xf32> to vector<8x32xf32>
      %87 = arith.addf %85, %86 : vector<8x32xf32>
      %88 = arith.truncf %87 : vector<8x32xf32> to vector<8x32xbf16>
      %c0_61 = arith.constant 0 : index
      %c0_62 = arith.constant 0 : index
      %89 = vector.load %arg12[%c0_61, %c0_62] : memref<32x64xbf16, #tpu.memory_space<vmem>>, vector<32x64xbf16>
      %cst_63 = arith.constant dense<0.000000e+00> : vector<8x64xf32>
      %90 = tpu.matmul %88, %89, %cst_63 {dimension_numbers = #tpu.dot_dimension_numbers<[1], [0], [0], [1], [0, 0, 1, 1], [], []>} : vector<8x32xbf16>, vector<32x64xbf16>, vector<8x64xf32> -> vector<8x64xf32>
      %c0_64 = arith.constant 0 : index
      %c0_65 = arith.constant 0 : index
      %91 = vector.load %arg13[%c0_64, %c0_65] : memref<1x64xf32, #tpu.memory_space<vmem>>, vector<1x64xf32>
      %92 = vector.broadcast %91 : vector<1x64xf32> to vector<8x64xf32>
      %93 = arith.addf %90, %92 : vector<8x64xf32>
      %cst_66 = arith.constant 0.000000e+00 : f32
      %94 = vector.broadcast %cst_66 : f32 to vector<8x64xf32>
      %95 = arith.maximumf %93, %94 : vector<8x64xf32>
      %96 = arith.truncf %95 : vector<8x64xf32> to vector<8x64xbf16>
      %c0_67 = arith.constant 0 : index
      %c0_68 = arith.constant 0 : index
      %97 = vector.load %arg14[%c0_67, %c0_68] : memref<64x32xbf16, #tpu.memory_space<vmem>>, vector<64x32xbf16>
      %cst_69 = arith.constant dense<0.000000e+00> : vector<8x32xf32>
      %98 = tpu.matmul %96, %97, %cst_69 {dimension_numbers = #tpu.dot_dimension_numbers<[1], [0], [0], [1], [0, 0, 1, 1], [], []>} : vector<8x64xbf16>, vector<64x32xbf16>, vector<8x32xf32> -> vector<8x32xf32>
      %c0_70 = arith.constant 0 : index
      %c0_71 = arith.constant 0 : index
      %99 = vector.load %arg15[%c0_70, %c0_71] : memref<1x32xf32, #tpu.memory_space<vmem>>, vector<1x32xf32>
      %100 = vector.broadcast %99 : vector<1x32xf32> to vector<8x32xf32>
      %101 = arith.addf %98, %100 : vector<8x32xf32>
      %102 = arith.addf %101, %87 : vector<8x32xf32>
      %c0_72 = arith.constant 0 : index
      %c0_73 = arith.constant 0 : index
      %103 = vector.load %arg16[%c0_72, %c0_73] : memref<1x32xf32, #tpu.memory_space<vmem>>, vector<1x32xf32>
      %c0_74 = arith.constant 0 : index
      %c0_75 = arith.constant 0 : index
      %104 = vector.load %arg17[%c0_74, %c0_75] : memref<1x32xf32, #tpu.memory_space<vmem>>, vector<1x32xf32>
      %cst_76 = arith.constant dense<0.000000e+00> : vector<8xf32>
      %105 = vector.multi_reduction <add>, %102, %cst_76 [1] : vector<8x32xf32> to vector<8xf32>
      %106 = vector.shape_cast %105 : vector<8xf32> to vector<8x1xf32>
      %cst_77 = arith.constant 3.200000e+01 : f32
      %107 = vector.broadcast %cst_77 : f32 to vector<8x1xf32>
      %108 = arith.divf %106, %107 : vector<8x1xf32>
      %109 = vector.broadcast %108 : vector<8x1xf32> to vector<8x32xf32>
      %110 = arith.subf %102, %109 : vector<8x32xf32>
      %111 = arith.mulf %110, %110 : vector<8x32xf32>
      %cst_78 = arith.constant dense<0.000000e+00> : vector<8xf32>
      %112 = vector.multi_reduction <add>, %111, %cst_78 [1] : vector<8x32xf32> to vector<8xf32>
      %113 = vector.shape_cast %112 : vector<8xf32> to vector<8x1xf32>
      %cst_79 = arith.constant 3.200000e+01 : f32
      %114 = vector.broadcast %cst_79 : f32 to vector<8x1xf32>
      %115 = arith.divf %113, %114 : vector<8x1xf32>
      %116 = vector.broadcast %103 : vector<1x32xf32> to vector<8x32xf32>
      %117 = arith.mulf %116, %110 : vector<8x32xf32>
      %cst_80 = arith.constant 9.99999996E-13 : f32
      %118 = vector.broadcast %cst_80 : f32 to vector<8x1xf32>
      %119 = arith.addf %115, %118 : vector<8x1xf32>
      %120 = math.rsqrt %119 : vector<8x1xf32>
      %121 = vector.broadcast %120 : vector<8x1xf32> to vector<8x32xf32>
      %122 = arith.mulf %117, %121 : vector<8x32xf32>
      %123 = vector.broadcast %104 : vector<1x32xf32> to vector<8x32xf32>
      %124 = arith.addf %122, %123 : vector<8x32xf32>
      %c0_81 = arith.constant 0 : index
      %c0_82 = arith.constant 0 : index
      %c0_83 = arith.constant 0 : index
      %125 = vector.load %arg18[%c0_81, %c0_82, %c0_83] : memref<1x8x32xf32, #tpu.memory_space<vmem>>, vector<1x8x32xf32>
      %126 = vector.shape_cast %125 : vector<1x8x32xf32> to vector<8x32xf32>
      %127 = vector.shape_cast %124 : vector<8x32xf32> to vector<1x8x32xf32>
      tpu.vector_store %arg18[%c0_81, %c0_82, %c0_83], %127 {strides = array<i32>} : memref<1x8x32xf32, #tpu.memory_space<vmem>>, vector<1x8x32xf32>,
    } else {
    }
    return
  }
  func.func @transform_0(%arg0: i32, %arg1: i32, %arg2: i32) -> (i32, i32, i32) {
    %c0_i32 = arith.constant 0 : i32
    %c0_i32_0 = arith.constant 0 : i32
    return %arg0, %arg1, %c0_i32 : i32, i32, i32
  }
  func.func @transform_1(%arg0: i32, %arg1: i32, %arg2: i32) -> (i32, i32, i32, i32) {
    %c0_i32 = arith.constant 0 : i32
    %c0_i32_0 = arith.constant 0 : i32
    %c0_i32_1 = arith.constant 0 : i32
    return %arg0, %c0_i32, %arg1, %c0_i32_0 : i32, i32, i32, i32
  }
  func.func @transform_2(%arg0: i32, %arg1: i32, %arg2: i32) -> (i32, i32, i32, i32) {
    %c0_i32 = arith.constant 0 : i32
    %c0_i32_0 = arith.constant 0 : i32
    %c0_i32_1 = arith.constant 0 : i32
    return %arg0, %c0_i32, %arg2, %c0_i32_0 : i32, i32, i32, i32
  }
  func.func @transform_3(%arg0: i32, %arg1: i32, %arg2: i32) -> (i32, i32, i32, i32) {
    %c0_i32 = arith.constant 0 : i32
    %c0_i32_0 = arith.constant 0 : i32
    %c0_i32_1 = arith.constant 0 : i32
    return %arg0, %c0_i32, %arg2, %c0_i32_0 : i32, i32, i32, i32
  }
  func.func @transform_4(%arg0: i32, %arg1: i32, %arg2: i32) -> (i32, i32, i32) {
    %c0_i32 = arith.constant 0 : i32
    return %arg0, %arg1, %arg2 : i32, i32, i32
  }
  func.func @transform_5(%arg0: i32, %arg1: i32, %arg2: i32) -> (i32, i32) {
    %c0_i32 = arith.constant 0 : i32
    %c0_i32_0 = arith.constant 0 : i32
    %c0_i32_1 = arith.constant 0 : i32
    return %c0_i32, %c0_i32_0 : i32, i32
  }
  func.func @transform_6(%arg0: i32, %arg1: i32, %arg2: i32) -> (i32, i32) {
    %c0_i32 = arith.constant 0 : i32
    %c0_i32_0 = arith.constant 0 : i32
    %c0_i32_1 = arith.constant 0 : i32
    return %c0_i32, %c0_i32_0 : i32, i32
  }
  func.func @transform_7(%arg0: i32, %arg1: i32, %arg2: i32) -> (i32, i32) {
    %c0_i32 = arith.constant 0 : i32
    %c0_i32_0 = arith.constant 0 : i32
    %c0_i32_1 = arith.constant 0 : i32
    return %c0_i32, %c0_i32_0 : i32, i32
  }
  func.func @transform_8(%arg0: i32, %arg1: i32, %arg2: i32) -> (i32, i32) {
    %c0_i32 = arith.constant 0 : i32
    %c0_i32_0 = arith.constant 0 : i32
    %c0_i32_1 = arith.constant 0 : i32
    return %c0_i32, %c0_i32_0 : i32, i32
  }
  func.func @transform_9(%arg0: i32, %arg1: i32, %arg2: i32) -> (i32, i32) {
    %c0_i32 = arith.constant 0 : i32
    %c0_i32_0 = arith.constant 0 : i32
    %c0_i32_1 = arith.constant 0 : i32
    return %c0_i32, %c0_i32_0 : i32, i32
  }
  func.func @transform_10(%arg0: i32, %arg1: i32, %arg2: i32) -> (i32, i32) {
    %c0_i32 = arith.constant 0 : i32
    %c0_i32_0 = arith.constant 0 : i32
    %c0_i32_1 = arith.constant 0 : i32
    return %c0_i32, %c0_i32_0 : i32, i32
  }
  func.func @transform_11(%arg0: i32, %arg1: i32, %arg2: i32) -> (i32, i32) {
    %c0_i32 = arith.constant 0 : i32
    %c0_i32_0 = arith.constant 0 : i32
    %c0_i32_1 = arith.constant 0 : i32
    return %c0_i32, %c0_i32_0 : i32, i32
  }
  func.func @transform_12(%arg0: i32, %arg1: i32, %arg2: i32) -> (i32, i32) {
    %c0_i32 = arith.constant 0 : i32
    %c0_i32_0 = arith.constant 0 : i32
    %c0_i32_1 = arith.constant 0 : i32
    return %c0_i32, %c0_i32_0 : i32, i32
  }
  func.func @transform_13(%arg0: i32, %arg1: i32, %arg2: i32) -> (i32, i32) {
    %c0_i32 = arith.constant 0 : i32
    %c0_i32_0 = arith.constant 0 : i32
    %c0_i32_1 = arith.constant 0 : i32
    return %c0_i32, %c0_i32_0 : i32, i32
  }
  func.func @transform_14(%arg0: i32, %arg1: i32, %arg2: i32) -> (i32, i32) {
    %c0_i32 = arith.constant 0 : i32
    %c0_i32_0 = arith.constant 0 : i32
    %c0_i32_1 = arith.constant 0 : i32
    return %c0_i32, %c0_i32_0 : i32, i32
  }
  func.func @transform_15(%arg0: i32, %arg1: i32, %arg2: i32) -> (i32, i32, i32) {
    %c0_i32 = arith.constant 0 : i32
    %c0_i32_0 = arith.constant 0 : i32
    return %arg0, %arg1, %c0_i32 : i32, i32, i32
  }
}

</mosaic_0001>

<llo_original>
// kernel: encoder_layer.2
$region0: #{encoder_layer.2}
  #allocation0 [shape = 'u32[]', space=smem, size = 0x4, offset = 0x4, fixed_abs, tag = 'smem constant byte address 0x4 - core index']
  #allocation1 [shape = 'u32[144,128]{1,0:T(1,128)}', space=vmem, size = 0x12000, scoped, tag = 'internal scratch']
  %s0 = inlined_call_operand.vmem [shape: bf16[2,8,32], index: 0, kind: input, shape index: {}]
  %s1 = inlined_call_operand.vmem [shape: bf16[32,96], index: 1, kind: input, shape index: {}]
  %s2 = inlined_call_operand.vmem [shape: f32[1,96], index: 2, kind: input, shape index: {}]
  %s3 = inlined_call_operand.vmem [shape: bf16[2,4,8,8], index: 3, kind: output, shape index: {0}]
  %s4 = inlined_call_operand.vmem [shape: bf16[2,4,8,8], index: 4, kind: output, shape index: {1}]
  %s5 = inlined_call_operand.vmem [shape: bf16[2,4,8,8], index: 5, kind: output, shape index: {2}]
  %6 = xla_tuple %s3, %s4, %s5
  %s7 = sld [smem:[#allocation0]]
  $region61: #{encoder_layer.2} parent=0
    _
  %s9 = ssub.s32 1, %s7
  %s10 = scalar_select 0, %s9, %s7
  loop: start=0, step=1, limit=4
  $region2: #{encoder_layer.2} parent=0 // loop_pre_header
    _
  $region3: #{encoder_layer.2} parent=0 // loop_header
    %s12 = sphi 0, %s16
    %p13 = scmp.ge.s32.totalorder %s12, 4
    %s19 = sphi 0, %s31
    %s20 = sphi 0, %s27
    %s21 = sphi 0, %s19
    %s22 = sphi 0, %s20
    %s23 = sphi 0, %s21
    %s24 = sphi 0, %s22
    %s36 = sphi 0, %s38
    %s39 = sphi 0, %s36
    %s40 = sphi 0, %s39
    %s56 = sphi 0, %s40
    %s60 = sphi 0, %s60
    %s62 = sphi 0, %s60
    %s63 = sphi 0, %s62
    %s77 = sphi 0, %s63
    %s81 = sphi 0, %s81
    %s83 = sphi 0, %s81
    %s84 = sphi 0, %s83
    %s98 = sphi 0, %s84
    %s106 = sphi 0, %s108
    %s109 = sphi 0, %s106
    %s110 = sphi 0, %s109
    %s126 = sphi 0, %s110
    %s134 = sphi 0, %s136
    %s137 = sphi 0, %s134
    %s138 = sphi 0, %s137
    %s154 = sphi 0, %s138
    %s162 = sphi 0, %s164
    %s165 = sphi 0, %s162
    %s166 = sphi 0, %s165
    %s182 = sphi 0, %s166
  $region4: #{encoder_layer.2} parent=0 // loop_header_branch
    %15 = sbr.rel (%p13) target = $region8
  $region5: #{encoder_layer.2} parent=0 // loop_body
    %s17 = ssub.s32 %s12, 1
    %s18 = ssub.s32 %s12, 2
    %s25 = sadd.s32 1, %s20
    %p26 = scmp.ge.s32.totalorder %s25, 1
    %s27 = scalar_select %p26, 0, %s25
    %s28 = sadd.s32 1, %s19
    %s29 = scalar_select %p26, %s28, %s19
    %p30 = scmp.ge.s32.totalorder %s29, 2
    %s31 = scalar_select %p30, 0, %s29
    %s32 = ssub.s32 %s19, %s31
    %s33 = ssub.s32 %s20, %s27
    %s34 = sor.u32 %s32, %s33
    %p35 = scmp.eq.s32.totalorder %s34, 0
    %s37 = sadd.s32 %s36, 1
    %s38 = scalar_select %p35, %s36, %s37
    %p41 = pneg %p35
    %p42 = scmp.eq.s32.totalorder %s12, 1
    %p43 = por %p41, %p42
    %p44 = scmp.ne.s32.totalorder %s36, %s39
    %p45 = scmp.eq.s32.totalorder %s12, 0
    %p46 = por %p44, %p45
    %p47 = scmp.ne.s32.totalorder %s36, %s39
    %p48 = scmp.eq.s32.totalorder %s17, 1
    %p49 = por %p47, %p48
    %p50 = scmp.ne.s32.totalorder %s39, %s40
    %p51 = scmp.eq.s32.totalorder %s17, 0
    %p52 = por %p50, %p51
    %p53 = scmp.ne.s32.totalorder %s39, %s40
    %p54 = scmp.eq.s32.totalorder %s18, 1
    %p55 = por %p53, %p54
    %p57 = scmp.ne.s32.totalorder %s40, %s56
    %p58 = scmp.eq.s32.totalorder %s18, 0
    %p59 = por %p57, %p58
    %s61 = sadd.s32 %s60, 1
    %p64 = scmp.eq.s32.totalorder %s12, 1
    %p65 = scmp.ne.s32.totalorder %s60, %s62
    %p66 = scmp.eq.s32.totalorder %s12, 0
    %p67 = por %p65, %p66
    %p68 = scmp.ne.s32.totalorder %s60, %s62
    %p69 = scmp.eq.s32.totalorder %s17, 1
    %p70 = por %p68, %p69
    %p71 = scmp.ne.s32.totalorder %s62, %s63
    %p72 = scmp.eq.s32.totalorder %s17, 0
    %p73 = por %p71, %p72
    %p74 = scmp.ne.s32.totalorder %s62, %s63
    %p75 = scmp.eq.s32.totalorder %s18, 1
    %p76 = por %p74, %p75
    %p78 = scmp.ne.s32.totalorder %s63, %s77
    %p79 = scmp.eq.s32.totalorder %s18, 0
    %p80 = por %p78, %p79
    %s82 = sadd.s32 %s81, 1
    %p85 = scmp.eq.s32.totalorder %s12, 1
    %p86 = scmp.ne.s32.totalorder %s81, %s83
    %p87 = scmp.eq.s32.totalorder %s12, 0
    %p88 = por %p86, %p87
    %p89 = scmp.ne.s32.totalorder %s81, %s83
    %p90 = scmp.eq.s32.totalorder %s17, 1
    %p91 = por %p89, %p90
    %p92 = scmp.ne.s32.totalorder %s83, %s84
    %p93 = scmp.eq.s32.totalorder %s17, 0
    %p94 = por %p92, %p93
    %p95 = scmp.ne.s32.totalorder %s83, %s84
    %p96 = scmp.eq.s32.totalorder %s18, 1
    %p97 = por %p95, %p96
    %p99 = scmp.ne.s32.totalorder %s84, %s98
    %p100 = scmp.eq.s32.totalorder %s18, 0
    %p101 = por %p99, %p100
    %s102 = ssub.s32 %s19, %s31
    %s103 = ssub.s32 %s20, %s27
    %s104 = sor.u32 %s102, %s103
    %p105 = scmp.eq.s32.totalorder %s104, 0
    %s107 = sadd.s32 %s106, 1
    %s108 = scalar_select %p105, %s106, %s107
    %p111 = pneg %p105
    %p112 = scmp.eq.s32.totalorder %s12, 1
    %p113 = por %p111, %p112
    %p114 = scmp.ne.s32.totalorder %s106, %s109
    %p115 = scmp.eq.s32.totalorder %s12, 0
    %p116 = por %p114, %p115
    %p117 = scmp.ne.s32.totalorder %s106, %s109
    %p118 = scmp.eq.s32.totalorder %s17, 1
    %p119 = por %p117, %p118
    %p120 = scmp.ne.s32.totalorder %s109, %s110
    %p121 = scmp.eq.s32.totalorder %s17, 0
    %p122 = por %p120, %p121
    %p123 = scmp.ne.s32.totalorder %s109, %s110
    %p124 = scmp.eq.s32.totalorder %s18, 1
    %p125 = por %p123, %p124
    %p127 = scmp.ne.s32.totalorder %s110, %s126
    %p128 = scmp.eq.s32.totalorder %s18, 0
    %p129 = por %p127, %p128
    %s130 = ssub.s32 %s19, %s31
    %s131 = ssub.s32 %s20, %s27
    %s132 = sor.u32 %s130, %s131
    %p133 = scmp.eq.s32.totalorder %s132, 0
    %s135 = sadd.s32 %s134, 1
    %s136 = scalar_select %p133, %s134, %s135
    %p139 = pneg %p133
    %p140 = scmp.eq.s32.totalorder %s12, 1
    %p141 = por %p139, %p140
    %p142 = scmp.ne.s32.totalorder %s134, %s137
    %p143 = scmp.eq.s32.totalorder %s12, 0
    %p144 = por %p142, %p143
    %p145 = scmp.ne.s32.totalorder %s134, %s137
    %p146 = scmp.eq.s32.totalorder %s17, 1
    %p147 = por %p145, %p146
    %p148 = scmp.ne.s32.totalorder %s137, %s138
    %p149 = scmp.eq.s32.totalorder %s17, 0
    %p150 = por %p148, %p149
    %p151 = scmp.ne.s32.totalorder %s137, %s138
    %p152 = scmp.eq.s32.totalorder %s18, 1
    %p153 = por %p151, %p152
    %p155 = scmp.ne.s32.totalorder %s138, %s154
    %p156 = scmp.eq.s32.totalorder %s18, 0
    %p157 = por %p155, %p156
    %s158 = ssub.s32 %s19, %s31
    %s159 = ssub.s32 %s20, %s27
    %s160 = sor.u32 %s158, %s159
    %p161 = scmp.eq.s32.totalorder %s160, 0
    %s163 = sadd.s32 %s162, 1
    %s164 = scalar_select %p161, %s162, %s163
    %p167 = pneg %p161
    %p168 = scmp.eq.s32.totalorder %s12, 1
    %p169 = por %p167, %p168
    %p170 = scmp.ne.s32.totalorder %s162, %s165
    %p171 = scmp.eq.s32.totalorder %s12, 0
    %p172 = por %p170, %p171
    %p173 = scmp.ne.s32.totalorder %s162, %s165
    %p174 = scmp.eq.s32.totalorder %s17, 1
    %p175 = por %p173, %p174
    %p176 = scmp.ne.s32.totalorder %s165, %s166
    %p177 = scmp.eq.s32.totalorder %s17, 0
    %p178 = por %p176, %p177
    %p179 = scmp.ne.s32.totalorder %s165, %s166
    %p180 = scmp.eq.s32.totalorder %s18, 1
    %p181 = por %p179, %p180
    %p183 = scmp.ne.s32.totalorder %s166, %s182
    %p184 = scmp.eq.s32.totalorder %s18, 0
    %p185 = por %p183, %p184
    %p186 = scmp.le.s32.totalorder 1, %s12
    %p187 = scmp.lt.s32.totalorder %s12, 3
    %p188 = pnand %p186, %p187
    %p189 = pneg %p188
    // Predicated region
    $region9: #{encoder_layer.2} parent=5 // pred_check
      _
    $region10: #{encoder_layer.2} parent=5 // pred_check_branch
      %191 = sbr.rel (%p188) target = $region12
    $region11: #{encoder_layer.2} parent=5 // pred_region
      %s192 = ssub.s32 %s12, 1
      // Predicated region
      $region13: #{encoder_layer.2} parent=11 // pred_check
        %p193 = pneg %p73
      $region14: #{encoder_layer.2} parent=11 // pred_check_branch
        %195 = sbr.rel (%p193) target = $region16
      $region15: #{encoder_layer.2} parent=11 // pred_region
        _
      $region16: #{encoder_layer.2} parent=11 // pred_fallthru
        _
      // Predicated region
      $region17: #{encoder_layer.2} parent=11 // pred_check
        %p196 = pneg %p94
      $region18: #{encoder_layer.2} parent=11 // pred_check_branch
        %198 = sbr.rel (%p196) target = $region20
      $region19: #{encoder_layer.2} parent=11 // pred_region
        _
      $region20: #{encoder_layer.2} parent=11 // pred_fallthru
        _
    $region12: #{encoder_layer.2} parent=5 // pred_fallthru
      _
    %p199 = scmp.lt.s32.totalorder %s12, 2
    // Predicated region
    $region21: #{encoder_layer.2} parent=5 // pred_check
      %p200 = pneg %p199
    $region22: #{encoder_layer.2} parent=5 // pred_check_branch
      %202 = sbr.rel (%p200) target = $region24
    $region23: #{encoder_layer.2} parent=5 // pred_region
      // Predicated region
      $region25: #{encoder_layer.2} parent=23 // pred_check
        %p203 = pneg %p46
      $region26: #{encoder_layer.2} parent=23 // pred_check_branch
        %205 = sbr.rel (%p203) target = $region28
      $region27: #{encoder_layer.2} parent=23 // pred_region
        %p206 = scmp.lt.s32.totalorder %s19, 1
        %s207 = scalar_select %p206, %s19, 1
        %p208 = scmp.lt.s32.totalorder %s20, 0
        %s209 = scalar_select %p208, %s20, 0
        %s210 = sadd.s32 %s209, %s207
        %s211 = smul.addr %s210, 4
        %s212 = scalar_lea.vmem %s0, %s211
      $region28: #{encoder_layer.2} parent=23 // pred_fallthru
        _
    $region24: #{encoder_layer.2} parent=5 // pred_fallthru
      _
    %p213 = scmp.le.s32.totalorder 1, %s12
    %p214 = scmp.lt.s32.totalorder %s12, 3
    %p215 = pnand %p213, %p214
    %p216 = pneg %p215
    // Predicated region
    $region29: #{encoder_layer.2} parent=5 // pred_check
      _
    $region30: #{encoder_layer.2} parent=5 // pred_check_branch
      %218 = sbr.rel (%p215) target = $region32
    $region31: #{encoder_layer.2} parent=5 // pred_region
      %s219 = ssub.s32 %s12, 1
      %p220 = scmp.lt.s32.totalorder %s21, 1
      %s221 = scalar_select %p220, %s21, 1
      %p222 = scmp.lt.s32.totalorder %s22, 0
      %s223 = scalar_select %p222, %s22, 0
      %s224 = sadd.s32 %s223, %s221
      %s225 = smul.addr %s224, 4
      %s226 = scalar_lea.vmem %s0, %s225
      %p227 = pneg %p52
      %p228 = pneg %p49
      %p229 = pneg %p73
      %p230 = pneg %p70
      %p231 = pneg %p94
      %p232 = pneg %p91
      %p233 = pneg %p122
      %p234 = pneg %p119
      %p235 = scmp.lt.s32.totalorder %s21, 1
      %s236 = scalar_select %p235, %s21, 1
      %p237 = scmp.lt.s32.totalorder %s22, 0
      %s238 = scalar_select %p237, %s22, 0
      %s239 = smul.addr %s236, 4
      %s240 = sadd.s32 %s238, %s239
      %s241 = smul.addr %s240, 4
      %s242 = scalar_lea.vmem %s3, %s241
      %p243 = pneg %p150
      %p244 = pneg %p147
      %p245 = scmp.lt.s32.totalorder %s21, 1
      %s246 = scalar_select %p245, %s21, 1
      %p247 = scmp.lt.s32.totalorder %s22, 0
      %s248 = scalar_select %p247, %s22, 0
      %s249 = smul.addr %s246, 4
      %s250 = sadd.s32 %s248, %s249
      %s251 = smul.addr %s250, 4
      %s252 = scalar_lea.vmem %s4, %s251
      %p253 = pneg %p178
      %p254 = pneg %p175
      %p255 = scmp.lt.s32.totalorder %s21, 1
      %s256 = scalar_select %p255, %s21, 1
      %p257 = scmp.lt.s32.totalorder %s22, 0
      %s258 = scalar_select %p257, %s22, 0
      %s259 = smul.addr %s256, 4
      %s260 = sadd.s32 %s258, %s259
      %s261 = smul.addr %s260, 4
      %s262 = scalar_lea.vmem %s5, %s261
      %p263 = scmp.lt.s32.totalorder %s21, 1
      %s264 = scalar_select %p263, %s21, 1
      %p265 = scmp.lt.s32.totalorder %s22, 0
      %s266 = scalar_select %p265, %s22, 0
      %s267 = sadd.s32 %s266, %s264
      %s268 = smul.addr %s267, 4
      %s269 = scalar_lea.vmem %s0, %s268
      %p270 = scmp.lt.s32.totalorder %s21, 1
      %s271 = scalar_select %p270, %s21, 1
      %p272 = scmp.lt.s32.totalorder %s22, 0
      %s273 = scalar_select %p272, %s22, 0
      %s274 = smul.addr %s271, 4
      %s275 = sadd.s32 %s273, %s274
      %s276 = smul.addr %s275, 4
      %s277 = scalar_lea.vmem %s3, %s276
      %p278 = scmp.lt.s32.totalorder %s21, 1
      %s279 = scalar_select %p278, %s21, 1
      %p280 = scmp.lt.s32.totalorder %s22, 0
      %s281 = scalar_select %p280, %s22, 0
      %s282 = smul.addr %s279, 4
      %s283 = sadd.s32 %s281, %s282
      %s284 = smul.addr %s283, 4
      %s285 = scalar_lea.vmem %s4, %s284
      %p286 = scmp.lt.s32.totalorder %s21, 1
      %s287 = scalar_select %p286, %s21, 1
      %p288 = scmp.lt.s32.totalorder %s22, 0
      %s289 = scalar_select %p288, %s22, 0
      %s290 = smul.addr %s287, 4
      %s291 = sadd.s32 %s289, %s290
      %s292 = smul.addr %s291, 4
      %s293 = scalar_lea.vmem %s5, %s292
      %v295 = vld [vmem:[%s269] sm:$0xf]
      %v296 = vld [vmem:[%s1] sm:$0xf]
      %v297 = vld [vmem:[%s1 + $0x4] sm:$0xf]
      %v298 = vld [vmem:[%s1 + $0x8] sm:$0xf]
      %v299 = vld [vmem:[%s1 + $0xc] sm:$0xf]
      %v300 = vld [vmem:[%s2] sm:$0x1]
      %v302 = vlaneseq
      %v303 = vshrl.u32 %v302, 7
      %v304 = vsub.s32 0, %v303
      %v305 = vrot.slane %v300, %v304
      %v311 = vunpack.c.l.b16 %v296
      %v312 = vunpack.c.l.b16 %v297
      %v313 = vunpack.c.l.b16 %v298
      %v314 = vunpack.c.l.b16 %v299
      %v315 = vpack.c.b16 %v312, %v311
      %v316 = vpack.c.b16 %v314, %v313
      %vm319 = vcmask 261120
      %v321 = vsel %vm319, %v295, 0
      %323 = vmatprep.subr.bf16.mxu0 0
      %324 = vmatpush1.bf16.msra.mxu0 %v315
      %325 = vmatprep.subr.bf16.mxu0 0
      %326 = vmatpush1.bf16.msra.mxu0 %v316
      %327 = vmatprep.subr.bf16.mxu0 0
      %328 = vmatpush1.bf16.msra.mxu0 0
      %329 = vmatprep.subr.bf16.mxu0 0
      %330 = vmatpush1.bf16.msra.mxu0 0
      %331 = vmatprep.subr.bf16.mxu0 0
      %332 = vmatpush1.bf16.msra.mxu0 0
      %333 = vmatprep.subr.bf16.mxu0 0
      %334 = vmatpush1.bf16.msra.mxu0 0
      %335 = vmatprep.subr.bf16.mxu0 0
      %336 = vmatpush1.bf16.msra.mxu0 0
      %337 = vmatprep.subr.bf16.mxu0 0
      %338 = vmatpush1.bf16.msra.mxu0 0
      %339 = vmatprep.subr.bf16.mxu0 0
      %340 = vmatpush1.bf16.msra.mxu0 0
      %341 = vmatprep.subr.bf16.mxu0 0
      %342 = vmatpush1.bf16.msra.mxu0 0
      %343 = vmatprep.subr.bf16.mxu0 0
      %344 = vmatpush1.bf16.msra.mxu0 0
      %345 = vmatprep.subr.bf16.mxu0 0
      %346 = vmatpush1.bf16.msra.mxu0 0
      %347 = vmatprep.subr.bf16.mxu0 0
      %348 = vmatpush1.bf16.msra.mxu0 0
      %349 = vmatprep.subr.bf16.mxu0 0
      %350 = vmatpush1.bf16.msra.mxu0 0
      %351 = vmatprep.subr.bf16.mxu0 0
      %352 = vmatpush1.bf16.msra.mxu0 0
      %353 = vmatprep.subr.bf16.mxu0 0
      %354 = vmatpush1.bf16.msra.mxu0 0
      %355 = vmatprep.mubr.bf16.mxu0 0
      %356 = vmatmul.mubr.bf16.gmra.mrb[0].mxu0 %v321
      %v357 = vpop.f32.mrb[0].mxu0
      %v358 = vadd.f32 %v305, %v357
      %v359 = vpop.f32.mrb[0].mxu0
      %v360 = vpop.f32.mrb[0].mxu0
      %v361 = vpop.f32.mrb[0].mxu0
      %362 = vdwg.mxu0
      %v363 = vmul.f32 %v358, 0.35355338
      %v364 = vpack.c.bf16 %v363, %v363
      %vm365 = vcmask 60416
      %366 = vst.msk [vmem:[%s277] sm:$0xf] %vm365, %v364
      %v367 = vpack.c.bf16 %v358, %v358
      %v369 = vunpack.c.l.b16 %v367
      %v370 = vpack.c.b16 %v369, %v369
      %371 = vrot.lane.b32.xlu0 %v370, 96
      %v372 = vpop.permute.xlu0 %371
      %374 = vst.msk [vmem:[%s285] sm:$0xf] %vm365, %v372
      %375 = vrot.lane.b32.xlu0 %v370, 64
      %v376 = vpop.permute.xlu0 %375
      %378 = vst.msk [vmem:[%s293] sm:$0xf] %vm365, %v376
      %v380 = vunpack.c.l.b16 %v364
      %v381 = vpack.c.b16 %v380, %v380
      %382 = vrot.lane.b32.xlu0 %v381, 120
      %v383 = vpop.permute.xlu0 %382
      %s385 = scalar_lea.vmem %s277, 4
      %386 = vst.msk [vmem:[%s385] sm:$0xf] %vm365, %v383
      %387 = vrot.lane.b32.xlu0 %v370, 88
      %v388 = vpop.permute.xlu0 %387
      %s390 = scalar_lea.vmem %s285, 4
      %391 = vst.msk [vmem:[%s390] sm:$0xf] %vm365, %v388
      %392 = vrot.lane.b32.xlu0 %v370, 56
      %v393 = vpop.permute.xlu0 %392
      %s395 = scalar_lea.vmem %s293, 4
      %396 = vst.msk [vmem:[%s395] sm:$0xf] %vm365, %v393
      %397 = vrot.lane.b32.xlu0 %v381, 112
      %v398 = vpop.permute.xlu0 %397
      %s400 = scalar_lea.vmem %s277, 8
      %401 = vst.msk [vmem:[%s400] sm:$0xf] %vm365, %v398
      %402 = vrot.lane.b32.xlu0 %v370, 80
      %v403 = vpop.permute.xlu0 %402
      %s405 = scalar_lea.vmem %s285, 8
      %406 = vst.msk [vmem:[%s405] sm:$0xf] %vm365, %v403
      %407 = vrot.lane.b32.xlu0 %v370, 48
      %v408 = vpop.permute.xlu0 %407
      %s410 = scalar_lea.vmem %s293, 8
      %411 = vst.msk [vmem:[%s410] sm:$0xf] %vm365, %v408
      %412 = vrot.lane.b32.xlu0 %v381, 104
      %v413 = vpop.permute.xlu0 %412
      %s415 = scalar_lea.vmem %s277, 12
      %416 = vst.msk [vmem:[%s415] sm:$0xf] %vm365, %v413
      %417 = vrot.lane.b32.xlu0 %v370, 72
      %v418 = vpop.permute.xlu0 %417
      %s420 = scalar_lea.vmem %s285, 12
      %421 = vst.msk [vmem:[%s420] sm:$0xf] %vm365, %v418
      %422 = vrot.lane.b32.xlu0 %v370, 40
      %v423 = vpop.permute.xlu0 %422
      %s425 = scalar_lea.vmem %s293, 12
      %426 = vst.msk [vmem:[%s425] sm:$0xf] %vm365, %v423
      %p427 = scmp.lt.s32.totalorder %s21, 1
      %s428 = scalar_select %p427, %s21, 1
      %p429 = scmp.lt.s32.totalorder %s22, 0
      %s430 = scalar_select %p429, %s22, 0
      %s431 = smul.addr %s428, 4
      %s432 = sadd.s32 %s430, %s431
      %s433 = smul.addr %s432, 4
      %s434 = scalar_lea.vmem %s3, %s433
      %p435 = scmp.lt.s32.totalorder %s21, 1
      %s436 = scalar_select %p435, %s21, 1
      %p437 = scmp.lt.s32.totalorder %s22, 0
      %s438 = scalar_select %p437, %s22, 0
      %s439 = smul.addr %s436, 4
      %s440 = sadd.s32 %s438, %s439
      %s441 = smul.addr %s440, 4
      %s442 = scalar_lea.vmem %s4, %s441
      %p443 = scmp.lt.s32.totalorder %s21, 1
      %s444 = scalar_select %p443, %s21, 1
      %p445 = scmp.lt.s32.totalorder %s22, 0
      %s446 = scalar_select %p445, %s22, 0
      %s447 = smul.addr %s444, 4
      %s448 = sadd.s32 %s446, %s447
      %s449 = smul.addr %s448, 4
      %s450 = scalar_lea.vmem %s5, %s449
      // Predicated region
      $region33: #{encoder_layer.2} parent=31 // pred_check
        %p451 = pneg %p119
      $region34: #{encoder_layer.2} parent=31 // pred_check_branch
        %453 = sbr.rel (%p451) target = $region36
      $region35: #{encoder_layer.2} parent=31 // pred_region
        _
      $region36: #{encoder_layer.2} parent=31 // pred_fallthru
        _
      // Predicated region
      $region37: #{encoder_layer.2} parent=31 // pred_check
        %p454 = pneg %p147
      $region38: #{encoder_layer.2} parent=31 // pred_check_branch
        %456 = sbr.rel (%p454) target = $region40
      $region39: #{encoder_layer.2} parent=31 // pred_region
        _
      $region40: #{encoder_layer.2} parent=31 // pred_fallthru
        _
      // Predicated region
      $region41: #{encoder_layer.2} parent=31 // pred_check
        %p457 = pneg %p175
      $region42: #{encoder_layer.2} parent=31 // pred_check_branch
        %459 = sbr.rel (%p457) target = $region44
      $region43: #{encoder_layer.2} parent=31 // pred_region
        _
      $region44: #{encoder_layer.2} parent=31 // pred_fallthru
        _
    $region32: #{encoder_layer.2} parent=5 // pred_fallthru
      _
    %p460 = scmp.le.s32.totalorder 2, %s12
    // Predicated region
    $region45: #{encoder_layer.2} parent=5 // pred_check
      %p461 = pneg %p460
    $region46: #{encoder_layer.2} parent=5 // pred_check_branch
      %463 = sbr.rel (%p461) target = $region48
    $region47: #{encoder_layer.2} parent=5 // pred_region
      %s464 = ssub.s32 %s12, 2
      // Predicated region
      $region49: #{encoder_layer.2} parent=47 // pred_check
        %p465 = pneg %p125
      $region50: #{encoder_layer.2} parent=47 // pred_check_branch
        %467 = sbr.rel (%p465) target = $region52
      $region51: #{encoder_layer.2} parent=47 // pred_region
        %p468 = scmp.lt.s32.totalorder %s23, 1
        %s469 = scalar_select %p468, %s23, 1
        %p470 = scmp.lt.s32.totalorder %s24, 0
        %s471 = scalar_select %p470, %s24, 0
        %s472 = smul.addr %s469, 4
        %s473 = sadd.s32 %s471, %s472
        %s474 = smul.addr %s473, 4
        %s475 = scalar_lea.vmem %s3, %s474
      $region52: #{encoder_layer.2} parent=47 // pred_fallthru
        _
      // Predicated region
      $region53: #{encoder_layer.2} parent=47 // pred_check
        %p476 = pneg %p153
      $region54: #{encoder_layer.2} parent=47 // pred_check_branch
        %478 = sbr.rel (%p476) target = $region56
      $region55: #{encoder_layer.2} parent=47 // pred_region
        %p479 = scmp.lt.s32.totalorder %s23, 1
        %s480 = scalar_select %p479, %s23, 1
        %p481 = scmp.lt.s32.totalorder %s24, 0
        %s482 = scalar_select %p481, %s24, 0
        %s483 = smul.addr %s480, 4
        %s484 = sadd.s32 %s482, %s483
        %s485 = smul.addr %s484, 4
        %s486 = scalar_lea.vmem %s4, %s485
      $region56: #{encoder_layer.2} parent=47 // pred_fallthru
        _
      // Predicated region
      $region57: #{encoder_layer.2} parent=47 // pred_check
        %p487 = pneg %p181
      $region58: #{encoder_layer.2} parent=47 // pred_check_branch
        %489 = sbr.rel (%p487) target = $region60
      $region59: #{encoder_layer.2} parent=47 // pred_region
        %p490 = scmp.lt.s32.totalorder %s23, 1
        %s491 = scalar_select %p490, %s23, 1
        %p492 = scmp.lt.s32.totalorder %s24, 0
        %s493 = scalar_select %p492, %s24, 0
        %s494 = smul.addr %s491, 4
        %s495 = sadd.s32 %s493, %s494
        %s496 = smul.addr %s495, 4
        %s497 = scalar_lea.vmem %s5, %s496
      $region60: #{encoder_layer.2} parent=47 // pred_fallthru
        _
    $region48: #{encoder_layer.2} parent=5 // pred_fallthru
      _
  $region6: #{encoder_layer.2} parent=0 // loop_footer
    %s16 = sadd.s32 1, %s12
  $region7: #{encoder_layer.2} parent=0 // loop_footer_branch
    %11 = sbr.rel target = $region3
  $region8: #{encoder_layer.2} parent=0 // loop_exit
    _

// kernel: encoder_layer.3
$region0: #{encoder_layer.3}
  #allocation0 [shape = 'u32[]', space=smem, size = 0x4, offset = 0x4, fixed_abs, tag = 'smem constant byte address 0x4 - core index']
  #allocation1 [shape = 'u32[144,128]{1,0:T(1,128)}', space=vmem, size = 0x12000, scoped, tag = 'internal scratch']
  #allocation2 [shape = 'f32[4,8,1]{2,1,0:T(8,128)}', space=vmem, size = 0x4000, scoped, tag = 'scratch operand']
  #allocation3 [shape = 'f32[4,8,1]{2,1,0:T(8,128)}', space=vmem, size = 0x4000, scoped, tag = 'scratch operand']
  #allocation4 [shape = 'f32[4,8,8]{2,1,0:T(8,128)}', space=vmem, size = 0x4000, scoped, tag = 'scratch operand']
  %s0 = inlined_call_operand.vmem [shape: bf16[2,8,32], index: 0, kind: input, shape index: {}]
  %s1 = inlined_call_operand.vmem [shape: bf16[2,4,8,8], index: 1, kind: input, shape index: {}]
  %s2 = inlined_call_operand.vmem [shape: bf16[2,4,8,8], index: 2, kind: input, shape index: {}]
  %s3 = inlined_call_operand.vmem [shape: bf16[2,4,8,8], index: 3, kind: input, shape index: {}]
  %s4 = inlined_call_operand.vmem [shape: bf16[2,8,8], index: 4, kind: input, shape index: {}]
  %s5 = inlined_call_operand.vmem [shape: bf16[32,32], index: 5, kind: input, shape index: {}]
  %s6 = inlined_call_operand.vmem [shape: f32[1,32], index: 6, kind: input, shape index: {}]
  %s7 = inlined_call_operand.vmem [shape: f32[1,32], index: 7, kind: input, shape index: {}]
  %s8 = inlined_call_operand.vmem [shape: f32[1,32], index: 8, kind: input, shape index: {}]
  %s9 = inlined_call_operand.vmem [shape: bf16[32,64], index: 9, kind: input, shape index: {}]
  %s10 = inlined_call_operand.vmem [shape: f32[1,64], index: 10, kind: input, shape index: {}]
  %s11 = inlined_call_operand.vmem [shape: bf16[64,32], index: 11, kind: input, shape index: {}]
  %s12 = inlined_call_operand.vmem [shape: f32[1,32], index: 12, kind: input, shape index: {}]
  %s13 = inlined_call_operand.vmem [shape: f32[1,32], index: 13, kind: input, shape index: {}]
  %s14 = inlined_call_operand.vmem [shape: f32[1,32], index: 14, kind: input, shape index: {}]
  %s15 = inlined_call_operand.hbm [shape: f32[2,8,32], index: 15, kind: output, shape index: {}]
  %s16 = sld [smem:[#allocation0]]
  $region101: #{encoder_layer.3} parent=0
    _
  %s18 = ssub.s32 1, %s16
  %s19 = scalar_select 0, %s18, %s16
  $region1: #{encoder_layer.3} parent=0
    #allocation5 [shape = 'u8[8192]{0}', space=vmem, size = 0x2000, scoped, tag = 'output window, operand 0']
    #allocation6 [shape = 's32[2]{0}', space=sflag, size = 0x8, scoped, tag = 'scoped memory for encoder_layer.3']
    %20 = vsyncpa [#allocation6], 0
    %s21 = scalar_lea.sflag [#allocation6], 1
    %22 = vsyncpa %s21, 0
    loop: start=0, step=1, limit=4
    $region2: #{encoder_layer.3} parent=1 // loop_pre_header
      _
    $region3: #{encoder_layer.3} parent=1 // loop_header
      %s24 = sphi 0, %s28
      %p25 = scmp.ge.s32.totalorder %s24, 4
      %s31 = sphi 0, %s50
      %s32 = sphi 0, %s46
      %s33 = sphi 0, %s42
      %s34 = sphi 0, %s31
      %s35 = sphi 0, %s32
      %s36 = sphi 0, %s33
      %s37 = sphi 0, %s34
      %s38 = sphi 0, %s35
      %s39 = sphi 0, %s36
      %s55 = sphi 0, %s57
      %s58 = sphi 0, %s55
      %s59 = sphi 0, %s58
      %s75 = sphi 0, %s59
      %s83 = sphi 0, %s85
      %s86 = sphi 0, %s83
      %s87 = sphi 0, %s86
      %s103 = sphi 0, %s87
      %s111 = sphi 0, %s113
      %s114 = sphi 0, %s111
      %s115 = sphi 0, %s114
      %s131 = sphi 0, %s115
      %s139 = sphi 0, %s141
      %s142 = sphi 0, %s139
      %s143 = sphi 0, %s142
      %s159 = sphi 0, %s143
      %s169 = sphi 0, %s171
      %s172 = sphi 0, %s169
      %s173 = sphi 0, %s172
      %s189 = sphi 0, %s173
      %s193 = sphi 0, %s193
      %s195 = sphi 0, %s193
      %s196 = sphi 0, %s195
      %s210 = sphi 0, %s196
      %s214 = sphi 0, %s214
      %s216 = sphi 0, %s214
      %s217 = sphi 0, %s216
      %s231 = sphi 0, %s217
      %s235 = sphi 0, %s235
      %s237 = sphi 0, %s235
      %s238 = sphi 0, %s237
      %s252 = sphi 0, %s238
      %s256 = sphi 0, %s256
      %s258 = sphi 0, %s256
      %s259 = sphi 0, %s258
      %s273 = sphi 0, %s259
      %s277 = sphi 0, %s277
      %s279 = sphi 0, %s277
      %s280 = sphi 0, %s279
      %s294 = sphi 0, %s280
      %s298 = sphi 0, %s298
      %s300 = sphi 0, %s298
      %s301 = sphi 0, %s300
      %s315 = sphi 0, %s301
      %s319 = sphi 0, %s319
      %s321 = sphi 0, %s319
      %s322 = sphi 0, %s321
      %s336 = sphi 0, %s322
      %s340 = sphi 0, %s340
      %s342 = sphi 0, %s340
      %s343 = sphi 0, %s342
      %s357 = sphi 0, %s343
      %s361 = sphi 0, %s361
      %s363 = sphi 0, %s361
      %s364 = sphi 0, %s363
      %s378 = sphi 0, %s364
      %s382 = sphi 0, %s382
      %s384 = sphi 0, %s382
      %s385 = sphi 0, %s384
      %s399 = sphi 0, %s385
      %s407 = sphi 0, %s409
      %s410 = sphi 0, %s407
      %s411 = sphi 0, %s410
      %s427 = sphi 0, %s411
    $region4: #{encoder_layer.3} parent=1 // loop_header_branch
      %27 = sbr.rel (%p25) target = $region8
    $region5: #{encoder_layer.3} parent=1 // loop_body
      %s29 = ssub.s32 %s24, 1
      %s30 = ssub.s32 %s24, 2
      %s40 = sadd.s32 1, %s33
      %p41 = scmp.ge.s32.totalorder %s40, 1
      %s42 = scalar_select %p41, 0, %s40
      %s43 = sadd.s32 1, %s32
      %s44 = scalar_select %p41, %s43, %s32
      %p45 = scmp.ge.s32.totalorder %s44, 1
      %s46 = scalar_select %p45, 0, %s44
      %s47 = sadd.s32 1, %s31
      %s48 = scalar_select %p45, %s47, %s31
      %p49 = scmp.ge.s32.totalorder %s48, 2
      %s50 = scalar_select %p49, 0, %s48
      %s51 = ssub.s32 %s31, %s50
      %s52 = ssub.s32 %s32, %s46
      %s53 = sor.u32 %s51, %s52
      %p54 = scmp.eq.s32.totalorder %s53, 0
      %s56 = sadd.s32 %s55, 1
      %s57 = scalar_select %p54, %s55, %s56
      %p60 = pneg %p54
      %p61 = scmp.eq.s32.totalorder %s24, 1
      %p62 = por %p60, %p61
      %p63 = scmp.ne.s32.totalorder %s55, %s58
      %p64 = scmp.eq.s32.totalorder %s24, 0
      %p65 = por %p63, %p64
      %p66 = scmp.ne.s32.totalorder %s55, %s58
      %p67 = scmp.eq.s32.totalorder %s29, 1
      %p68 = por %p66, %p67
      %p69 = scmp.ne.s32.totalorder %s58, %s59
      %p70 = scmp.eq.s32.totalorder %s29, 0
      %p71 = por %p69, %p70
      %p72 = scmp.ne.s32.totalorder %s58, %s59
      %p73 = scmp.eq.s32.totalorder %s30, 1
      %p74 = por %p72, %p73
      %p76 = scmp.ne.s32.totalorder %s59, %s75
      %p77 = scmp.eq.s32.totalorder %s30, 0
      %p78 = por %p76, %p77
      %s79 = ssub.s32 %s31, %s50
      %s80 = ssub.s32 %s32, %s46
      %s81 = sor.u32 %s79, %s80
      %p82 = scmp.eq.s32.totalorder %s81, 0
      %s84 = sadd.s32 %s83, 1
      %s85 = scalar_select %p82, %s83, %s84
      %p88 = pneg %p82
      %p89 = scmp.eq.s32.totalorder %s24, 1
      %p90 = por %p88, %p89
      %p91 = scmp.ne.s32.totalorder %s83, %s86
      %p92 = scmp.eq.s32.totalorder %s24, 0
      %p93 = por %p91, %p92
      %p94 = scmp.ne.s32.totalorder %s83, %s86
      %p95 = scmp.eq.s32.totalorder %s29, 1
      %p96 = por %p94, %p95
      %p97 = scmp.ne.s32.totalorder %s86, %s87
      %p98 = scmp.eq.s32.totalorder %s29, 0
      %p99 = por %p97, %p98
      %p100 = scmp.ne.s32.totalorder %s86, %s87
      %p101 = scmp.eq.s32.totalorder %s30, 1
      %p102 = por %p100, %p101
      %p104 = scmp.ne.s32.totalorder %s87, %s103
      %p105 = scmp.eq.s32.totalorder %s30, 0
      %p106 = por %p104, %p105
      %s107 = ssub.s32 %s31, %s50
      %s108 = ssub.s32 %s33, %s42
      %s109 = sor.u32 %s107, %s108
      %p110 = scmp.eq.s32.totalorder %s109, 0
      %s112 = sadd.s32 %s111, 1
      %s113 = scalar_select %p110, %s111, %s112
      %p116 = pneg %p110
      %p117 = scmp.eq.s32.totalorder %s24, 1
      %p118 = por %p116, %p117
      %p119 = scmp.ne.s32.totalorder %s111, %s114
      %p120 = scmp.eq.s32.totalorder %s24, 0
      %p121 = por %p119, %p120
      %p122 = scmp.ne.s32.totalorder %s111, %s114
      %p123 = scmp.eq.s32.totalorder %s29, 1
      %p124 = por %p122, %p123
      %p125 = scmp.ne.s32.totalorder %s114, %s115
      %p126 = scmp.eq.s32.totalorder %s29, 0
      %p127 = por %p125, %p126
      %p128 = scmp.ne.s32.totalorder %s114, %s115
      %p129 = scmp.eq.s32.totalorder %s30, 1
      %p130 = por %p128, %p129
      %p132 = scmp.ne.s32.totalorder %s115, %s131
      %p133 = scmp.eq.s32.totalorder %s30, 0
      %p134 = por %p132, %p133
      %s135 = ssub.s32 %s31, %s50
      %s136 = ssub.s32 %s33, %s42
      %s137 = sor.u32 %s135, %s136
      %p138 = scmp.eq.s32.totalorder %s137, 0
      %s140 = sadd.s32 %s139, 1
      %s141 = scalar_select %p138, %s139, %s140
      %p144 = pneg %p138
      %p145 = scmp.eq.s32.totalorder %s24, 1
      %p146 = por %p144, %p145
      %p147 = scmp.ne.s32.totalorder %s139, %s142
      %p148 = scmp.eq.s32.totalorder %s24, 0
      %p149 = por %p147, %p148
      %p150 = scmp.ne.s32.totalorder %s139, %s142
      %p151 = scmp.eq.s32.totalorder %s29, 1
      %p152 = por %p150, %p151
      %p153 = scmp.ne.s32.totalorder %s142, %s143
      %p154 = scmp.eq.s32.totalorder %s29, 0
      %p155 = por %p153, %p154
      %p156 = scmp.ne.s32.totalorder %s142, %s143
      %p157 = scmp.eq.s32.totalorder %s30, 1
      %p158 = por %p156, %p157
      %p160 = scmp.ne.s32.totalorder %s143, %s159
      %p161 = scmp.eq.s32.totalorder %s30, 0
      %p162 = por %p160, %p161
      %s163 = ssub.s32 %s31, %s50
      %s164 = ssub.s32 %s32, %s46
      %s165 = sor.u32 %s163, %s164
      %s166 = ssub.s32 %s33, %s42
      %s167 = sor.u32 %s165, %s166
      %p168 = scmp.eq.s32.totalorder %s167, 0
      %s170 = sadd.s32 %s169, 1
      %s171 = scalar_select %p168, %s169, %s170
      %p174 = pneg %p168
      %p175 = scmp.eq.s32.totalorder %s24, 1
      %p176 = por %p174, %p175
      %p177 = scmp.ne.s32.totalorder %s169, %s172
      %p178 = scmp.eq.s32.totalorder %s24, 0
      %p179 = por %p177, %p178
      %p180 = scmp.ne.s32.totalorder %s169, %s172
      %p181 = scmp.eq.s32.totalorder %s29, 1
      %p182 = por %p180, %p181
      %p183 = scmp.ne.s32.totalorder %s172, %s173
      %p184 = scmp.eq.s32.totalorder %s29, 0
      %p185 = por %p183, %p184
      %p186 = scmp.ne.s32.totalorder %s172, %s173
      %p187 = scmp.eq.s32.totalorder %s30, 1
      %p188 = por %p186, %p187
      %p190 = scmp.ne.s32.totalorder %s173, %s189
      %p191 = scmp.eq.s32.totalorder %s30, 0
      %p192 = por %p190, %p191
      %s194 = sadd.s32 %s193, 1
      %p197 = scmp.eq.s32.totalorder %s24, 1
      %p198 = scmp.ne.s32.totalorder %s193, %s195
      %p199 = scmp.eq.s32.totalorder %s24, 0
      %p200 = por %p198, %p199
      %p201 = scmp.ne.s32.totalorder %s193, %s195
      %p202 = scmp.eq.s32.totalorder %s29, 1
      %p203 = por %p201, %p202
      %p204 = scmp.ne.s32.totalorder %s195, %s196
      %p205 = scmp.eq.s32.totalorder %s29, 0
      %p206 = por %p204, %p205
      %p207 = scmp.ne.s32.totalorder %s195, %s196
      %p208 = scmp.eq.s32.totalorder %s30, 1
      %p209 = por %p207, %p208
      %p211 = scmp.ne.s32.totalorder %s196, %s210
      %p212 = scmp.eq.s32.totalorder %s30, 0
      %p213 = por %p211, %p212
      %s215 = sadd.s32 %s214, 1
      %p218 = scmp.eq.s32.totalorder %s24, 1
      %p219 = scmp.ne.s32.totalorder %s214, %s216
      %p220 = scmp.eq.s32.totalorder %s24, 0
      %p221 = por %p219, %p220
      %p222 = scmp.ne.s32.totalorder %s214, %s216
      %p223 = scmp.eq.s32.totalorder %s29, 1
      %p224 = por %p222, %p223
      %p225 = scmp.ne.s32.totalorder %s216, %s217
      %p226 = scmp.eq.s32.totalorder %s29, 0
      %p227 = por %p225, %p226
      %p228 = scmp.ne.s32.totalorder %s216, %s217
      %p229 = scmp.eq.s32.totalorder %s30, 1
      %p230 = por %p228, %p229
      %p232 = scmp.ne.s32.totalorder %s217, %s231
      %p233 = scmp.eq.s32.totalorder %s30, 0
      %p234 = por %p232, %p233
      %s236 = sadd.s32 %s235, 1
      %p239 = scmp.eq.s32.totalorder %s24, 1
      %p240 = scmp.ne.s32.totalorder %s235, %s237
      %p241 = scmp.eq.s32.totalorder %s24, 0
      %p242 = por %p240, %p241
      %p243 = scmp.ne.s32.totalorder %s235, %s237
      %p244 = scmp.eq.s32.totalorder %s29, 1
      %p245 = por %p243, %p244
      %p246 = scmp.ne.s32.totalorder %s237, %s238
      %p247 = scmp.eq.s32.totalorder %s29, 0
      %p248 = por %p246, %p247
      %p249 = scmp.ne.s32.totalorder %s237, %s238
      %p250 = scmp.eq.s32.totalorder %s30, 1
      %p251 = por %p249, %p250
      %p253 = scmp.ne.s32.totalorder %s238, %s252
      %p254 = scmp.eq.s32.totalorder %s30, 0
      %p255 = por %p253, %p254
      %s257 = sadd.s32 %s256, 1
      %p260 = scmp.eq.s32.totalorder %s24, 1
      %p261 = scmp.ne.s32.totalorder %s256, %s258
      %p262 = scmp.eq.s32.totalorder %s24, 0
      %p263 = por %p261, %p262
      %p264 = scmp.ne.s32.totalorder %s256, %s258
      %p265 = scmp.eq.s32.totalorder %s29, 1
      %p266 = por %p264, %p265
      %p267 = scmp.ne.s32.totalorder %s258, %s259
      %p268 = scmp.eq.s32.totalorder %s29, 0
      %p269 = por %p267, %p268
      %p270 = scmp.ne.s32.totalorder %s258, %s259
      %p271 = scmp.eq.s32.totalorder %s30, 1
      %p272 = por %p270, %p271
      %p274 = scmp.ne.s32.totalorder %s259, %s273
      %p275 = scmp.eq.s32.totalorder %s30, 0
      %p276 = por %p274, %p275
      %s278 = sadd.s32 %s277, 1
      %p281 = scmp.eq.s32.totalorder %s24, 1
      %p282 = scmp.ne.s32.totalorder %s277, %s279
      %p283 = scmp.eq.s32.totalorder %s24, 0
      %p284 = por %p282, %p283
      %p285 = scmp.ne.s32.totalorder %s277, %s279
      %p286 = scmp.eq.s32.totalorder %s29, 1
      %p287 = por %p285, %p286
      %p288 = scmp.ne.s32.totalorder %s279, %s280
      %p289 = scmp.eq.s32.totalorder %s29, 0
      %p290 = por %p288, %p289
      %p291 = scmp.ne.s32.totalorder %s279, %s280
      %p292 = scmp.eq.s32.totalorder %s30, 1
      %p293 = por %p291, %p292
      %p295 = scmp.ne.s32.totalorder %s280, %s294
      %p296 = scmp.eq.s32.totalorder %s30, 0
      %p297 = por %p295, %p296
      %s299 = sadd.s32 %s298, 1
      %p302 = scmp.eq.s32.totalorder %s24, 1
      %p303 = scmp.ne.s32.totalorder %s298, %s300
      %p304 = scmp.eq.s32.totalorder %s24, 0
      %p305 = por %p303, %p304
      %p306 = scmp.ne.s32.totalorder %s298, %s300
      %p307 = scmp.eq.s32.totalorder %s29, 1
      %p308 = por %p306, %p307
      %p309 = scmp.ne.s32.totalorder %s300, %s301
      %p310 = scmp.eq.s32.totalorder %s29, 0
      %p311 = por %p309, %p310
      %p312 = scmp.ne.s32.totalorder %s300, %s301
      %p313 = scmp.eq.s32.totalorder %s30, 1
      %p314 = por %p312, %p313
      %p316 = scmp.ne.s32.totalorder %s301, %s315
      %p317 = scmp.eq.s32.totalorder %s30, 0
      %p318 = por %p316, %p317
      %s320 = sadd.s32 %s319, 1
      %p323 = scmp.eq.s32.totalorder %s24, 1
      %p324 = scmp.ne.s32.totalorder %s319, %s321
      %p325 = scmp.eq.s32.totalorder %s24, 0
      %p326 = por %p324, %p325
      %p327 = scmp.ne.s32.totalorder %s319, %s321
      %p328 = scmp.eq.s32.totalorder %s29, 1
      %p329 = por %p327, %p328
      %p330 = scmp.ne.s32.totalorder %s321, %s322
      %p331 = scmp.eq.s32.totalorder %s29, 0
      %p332 = por %p330, %p331
      %p333 = scmp.ne.s32.totalorder %s321, %s322
      %p334 = scmp.eq.s32.totalorder %s30, 1
      %p335 = por %p333, %p334
      %p337 = scmp.ne.s32.totalorder %s322, %s336
      %p338 = scmp.eq.s32.totalorder %s30, 0
      %p339 = por %p337, %p338
      %s341 = sadd.s32 %s340, 1
      %p344 = scmp.eq.s32.totalorder %s24, 1
      %p345 = scmp.ne.s32.totalorder %s340, %s342
      %p346 = scmp.eq.s32.totalorder %s24, 0
      %p347 = por %p345, %p346
      %p348 = scmp.ne.s32.totalorder %s340, %s342
      %p349 = scmp.eq.s32.totalorder %s29, 1
      %p350 = por %p348, %p349
      %p351 = scmp.ne.s32.totalorder %s342, %s343
      %p352 = scmp.eq.s32.totalorder %s29, 0
      %p353 = por %p351, %p352
      %p354 = scmp.ne.s32.totalorder %s342, %s343
      %p355 = scmp.eq.s32.totalorder %s30, 1
      %p356 = por %p354, %p355
      %p358 = scmp.ne.s32.totalorder %s343, %s357
      %p359 = scmp.eq.s32.totalorder %s30, 0
      %p360 = por %p358, %p359
      %s362 = sadd.s32 %s361, 1
      %p365 = scmp.eq.s32.totalorder %s24, 1
      %p366 = scmp.ne.s32.totalorder %s361, %s363
      %p367 = scmp.eq.s32.totalorder %s24, 0
      %p368 = por %p366, %p367
      %p369 = scmp.ne.s32.totalorder %s361, %s363
      %p370 = scmp.eq.s32.totalorder %s29, 1
      %p371 = por %p369, %p370
      %p372 = scmp.ne.s32.totalorder %s363, %s364
      %p373 = scmp.eq.s32.totalorder %s29, 0
      %p374 = por %p372, %p373
      %p375 = scmp.ne.s32.totalorder %s363, %s364
      %p376 = scmp.eq.s32.totalorder %s30, 1
      %p377 = por %p375, %p376
      %p379 = scmp.ne.s32.totalorder %s364, %s378
      %p380 = scmp.eq.s32.totalorder %s30, 0
      %p381 = por %p379, %p380
      %s383 = sadd.s32 %s382, 1
      %p386 = scmp.eq.s32.totalorder %s24, 1
      %p387 = scmp.ne.s32.totalorder %s382, %s384
      %p388 = scmp.eq.s32.totalorder %s24, 0
      %p389 = por %p387, %p388
      %p390 = scmp.ne.s32.totalorder %s382, %s384
      %p391 = scmp.eq.s32.totalorder %s29, 1
      %p392 = por %p390, %p391
      %p393 = scmp.ne.s32.totalorder %s384, %s385
      %p394 = scmp.eq.s32.totalorder %s29, 0
      %p395 = por %p393, %p394
      %p396 = scmp.ne.s32.totalorder %s384, %s385
      %p397 = scmp.eq.s32.totalorder %s30, 1
      %p398 = por %p396, %p397
      %p400 = scmp.ne.s32.totalorder %s385, %s399
      %p401 = scmp.eq.s32.totalorder %s30, 0
      %p402 = por %p400, %p401
      %s403 = ssub.s32 %s31, %s50
      %s404 = ssub.s32 %s32, %s46
      %s405 = sor.u32 %s403, %s404
      %p406 = scmp.eq.s32.totalorder %s405, 0
      %s408 = sadd.s32 %s407, 1
      %s409 = scalar_select %p406, %s407, %s408
      %p412 = pneg %p406
      %p413 = scmp.eq.s32.totalorder %s24, 1
      %p414 = por %p412, %p413
      %p415 = scmp.ne.s32.totalorder %s407, %s410
      %p416 = scmp.eq.s32.totalorder %s24, 0
      %p417 = por %p415, %p416
      %p418 = scmp.ne.s32.totalorder %s407, %s410
      %p419 = scmp.eq.s32.totalorder %s29, 1
      %p420 = por %p418, %p419
      %p421 = scmp.ne.s32.totalorder %s410, %s411
      %p422 = scmp.eq.s32.totalorder %s29, 0
      %p423 = por %p421, %p422
      %p424 = scmp.ne.s32.totalorder %s410, %s411
      %p425 = scmp.eq.s32.totalorder %s30, 1
      %p426 = por %p424, %p425
      %p428 = scmp.ne.s32.totalorder %s411, %s427
      %p429 = scmp.eq.s32.totalorder %s30, 0
      %p430 = por %p428, %p429
      %p431 = scmp.le.s32.totalorder 1, %s24
      %p432 = scmp.lt.s32.totalorder %s24, 3
      %p433 = pnand %p431, %p432
      %p434 = pneg %p433
      // Predicated region
      $region9: #{encoder_layer.3} parent=5 // pred_check
        _
      $region10: #{encoder_layer.3} parent=5 // pred_check_branch
        %436 = sbr.rel (%p433) target = $region12
      $region11: #{encoder_layer.3} parent=5 // pred_region
        %s437 = ssub.s32 %s24, 1
        // Predicated region
        $region13: #{encoder_layer.3} parent=11 // pred_check
          %p438 = pneg %p206
        $region14: #{encoder_layer.3} parent=11 // pred_check_branch
          %440 = sbr.rel (%p438) target = $region16
        $region15: #{encoder_layer.3} parent=11 // pred_region
          _
        $region16: #{encoder_layer.3} parent=11 // pred_fallthru
          _
        // Predicated region
        $region17: #{encoder_layer.3} parent=11 // pred_check
          %p441 = pneg %p227
        $region18: #{encoder_layer.3} parent=11 // pred_check_branch
          %443 = sbr.rel (%p441) target = $region20
        $region19: #{encoder_layer.3} parent=11 // pred_region
          _
        $region20: #{encoder_layer.3} parent=11 // pred_fallthru
          _
        // Predicated region
        $region21: #{encoder_layer.3} parent=11 // pred_check
          %p444 = pneg %p248
        $region22: #{encoder_layer.3} parent=11 // pred_check_branch
          %446 = sbr.rel (%p444) target = $region24
        $region23: #{encoder_layer.3} parent=11 // pred_region
          _
        $region24: #{encoder_layer.3} parent=11 // pred_fallthru
          _
        // Predicated region
        $region25: #{encoder_layer.3} parent=11 // pred_check
          %p447 = pneg %p269
        $region26: #{encoder_layer.3} parent=11 // pred_check_branch
          %449 = sbr.rel (%p447) target = $region28
        $region27: #{encoder_layer.3} parent=11 // pred_region
          _
        $region28: #{encoder_layer.3} parent=11 // pred_fallthru
          _
        // Predicated region
        $region29: #{encoder_layer.3} parent=11 // pred_check
          %p450 = pneg %p290
        $region30: #{encoder_layer.3} parent=11 // pred_check_branch
          %452 = sbr.rel (%p450) target = $region32
        $region31: #{encoder_layer.3} parent=11 // pred_region
          _
        $region32: #{encoder_layer.3} parent=11 // pred_fallthru
          _
        // Predicated region
        $region33: #{encoder_layer.3} parent=11 // pred_check
          %p453 = pneg %p311
        $region34: #{encoder_layer.3} parent=11 // pred_check_branch
          %455 = sbr.rel (%p453) target = $region36
        $region35: #{encoder_layer.3} parent=11 // pred_region
          _
        $region36: #{encoder_layer.3} parent=11 // pred_fallthru
          _
        // Predicated region
        $region37: #{encoder_layer.3} parent=11 // pred_check
          %p456 = pneg %p332
        $region38: #{encoder_layer.3} parent=11 // pred_check_branch
          %458 = sbr.rel (%p456) target = $region40
        $region39: #{encoder_layer.3} parent=11 // pred_region
          _
        $region40: #{encoder_layer.3} parent=11 // pred_fallthru
          _
        // Predicated region
        $region41: #{encoder_layer.3} parent=11 // pred_check
          %p459 = pneg %p353
        $region42: #{encoder_layer.3} parent=11 // pred_check_branch
          %461 = sbr.rel (%p459) target = $region44
        $region43: #{encoder_layer.3} parent=11 // pred_region
          _
        $region44: #{encoder_layer.3} parent=11 // pred_fallthru
          _
        // Predicated region
        $region45: #{encoder_layer.3} parent=11 // pred_check
          %p462 = pneg %p374
        $region46: #{encoder_layer.3} parent=11 // pred_check_branch
          %464 = sbr.rel (%p462) target = $region48
        $region47: #{encoder_layer.3} parent=11 // pred_region
          _
        $region48: #{encoder_layer.3} parent=11 // pred_fallthru
          _
        // Predicated region
        $region49: #{encoder_layer.3} parent=11 // pred_check
          %p465 = pneg %p395
        $region50: #{encoder_layer.3} parent=11 // pred_check_branch
          %467 = sbr.rel (%p465) target = $region52
        $region51: #{encoder_layer.3} parent=11 // pred_region
          _
        $region52: #{encoder_layer.3} parent=11 // pred_fallthru
          _
      $region12: #{encoder_layer.3} parent=5 // pred_fallthru
        _
      %p468 = scmp.lt.s32.totalorder %s24, 2
      // Predicated region
      $region53: #{encoder_layer.3} parent=5 // pred_check
        %p469 = pneg %p468
      $region54: #{encoder_layer.3} parent=5 // pred_check_branch
        %471 = sbr.rel (%p469) target = $region56
      $region55: #{encoder_layer.3} parent=5 // pred_region
        // Predicated region
        $region57: #{encoder_layer.3} parent=55 // pred_check
          %p472 = pneg %p65
        $region58: #{encoder_layer.3} parent=55 // pred_check_branch
          %474 = sbr.rel (%p472) target = $region60
        $region59: #{encoder_layer.3} parent=55 // pred_region
          %p475 = scmp.lt.s32.totalorder %s31, 1
          %s476 = scalar_select %p475, %s31, 1
          %p477 = scmp.lt.s32.totalorder %s32, 0
          %s478 = scalar_select %p477, %s32, 0
          %s479 = sadd.s32 %s478, %s476
          %s480 = smul.addr %s479, 4
          %s481 = scalar_lea.vmem %s0, %s480
        $region60: #{encoder_layer.3} parent=55 // pred_fallthru
          _
        // Predicated region
        $region61: #{encoder_layer.3} parent=55 // pred_check
          %p482 = pneg %p93
        $region62: #{encoder_layer.3} parent=55 // pred_check_branch
          %484 = sbr.rel (%p482) target = $region64
        $region63: #{encoder_layer.3} parent=55 // pred_region
          %p485 = scmp.lt.s32.totalorder %s31, 1
          %s486 = scalar_select %p485, %s31, 1
          %p487 = scmp.lt.s32.totalorder %s32, 0
          %s488 = scalar_select %p487, %s32, 0
          %s489 = smul.addr %s486, 4
          %s490 = sadd.s32 %s488, %s489
          %s491 = smul.addr %s490, 4
          %s492 = scalar_lea.vmem %s1, %s491
        $region64: #{encoder_layer.3} parent=55 // pred_fallthru
          _
        // Predicated region
        $region65: #{encoder_layer.3} parent=55 // pred_check
          %p493 = pneg %p121
        $region66: #{encoder_layer.3} parent=55 // pred_check_branch
          %495 = sbr.rel (%p493) target = $region68
        $region67: #{encoder_layer.3} parent=55 // pred_region
          %p496 = scmp.lt.s32.totalorder %s31, 1
          %s497 = scalar_select %p496, %s31, 1
          %p498 = scmp.lt.s32.totalorder %s33, 0
          %s499 = scalar_select %p498, %s33, 0
          %s500 = smul.addr %s497, 4
          %s501 = sadd.s32 %s499, %s500
          %s502 = smul.addr %s501, 4
          %s503 = scalar_lea.vmem %s2, %s502
        $region68: #{encoder_layer.3} parent=55 // pred_fallthru
          _
        // Predicated region
        $region69: #{encoder_layer.3} parent=55 // pred_check
          %p504 = pneg %p149
        $region70: #{encoder_layer.3} parent=55 // pred_check_branch
          %506 = sbr.rel (%p504) target = $region72
        $region71: #{encoder_layer.3} parent=55 // pred_region
          %p507 = scmp.lt.s32.totalorder %s31, 1
          %s508 = scalar_select %p507, %s31, 1
          %p509 = scmp.lt.s32.totalorder %s33, 0
          %s510 = scalar_select %p509, %s33, 0
          %s511 = smul.addr %s508, 4
          %s512 = sadd.s32 %s510, %s511
          %s513 = smul.addr %s512, 4
          %s514 = scalar_lea.vmem %s3, %s513
        $region72: #{encoder_layer.3} parent=55 // pred_fallthru
          _
        // Predicated region
        $region73: #{encoder_layer.3} parent=55 // pred_check
          %p515 = pneg %p179
        $region74: #{encoder_layer.3} parent=55 // pred_check_branch
          %517 = sbr.rel (%p515) target = $region76
        $region75: #{encoder_layer.3} parent=55 // pred_region
          %p518 = scmp.lt.s32.totalorder %s31, 1
          %s519 = scalar_select %p518, %s31, 1
          %p520 = scmp.lt.s32.totalorder %s32, 0
          %s521 = scalar_select %p520, %s32, 0
          %p522 = scmp.lt.s32.totalorder %s33, 0
          %s523 = scalar_select %p522, %s33, 0
          %s524 = sadd.s32 %s523, %s521
          %s525 = sadd.s32 %s524, %s519
          %s526 = smul.addr %s525, 4
          %s527 = scalar_lea.vmem %s4, %s526
        $region76: #{encoder_layer.3} parent=55 // pred_fallthru
          _
      $region56: #{encoder_layer.3} parent=5 // pred_fallthru
        _
      %p528 = scmp.le.s32.totalorder 1, %s24
      %p529 = scmp.lt.s32.totalorder %s24, 3
      %p530 = pnand %p528, %p529
      %p531 = pneg %p530
      // Predicated region
      $region77: #{encoder_layer.3} parent=5 // pred_check
        _
      $region78: #{encoder_layer.3} parent=5 // pred_check_branch
        %533 = sbr.rel (%p530) target = $region80
      $region79: #{encoder_layer.3} parent=5 // pred_region
        %s534 = ssub.s32 %s24, 1
        %p535 = scmp.lt.s32.totalorder %s34, 1
        %s536 = scalar_select %p535, %s34, 1
        %p537 = scmp.lt.s32.totalorder %s35, 0
        %s538 = scalar_select %p537, %s35, 0
        %s539 = sadd.s32 %s538, %s536
        %s540 = smul.addr %s539, 4
        %s541 = scalar_lea.vmem %s0, %s540
        %p542 = pneg %p71
        %p543 = pneg %p68
        %p544 = scmp.lt.s32.totalorder %s34, 1
        %s545 = scalar_select %p544, %s34, 1
        %p546 = scmp.lt.s32.totalorder %s35, 0
        %s547 = scalar_select %p546, %s35, 0
        %s548 = smul.addr %s545, 4
        %s549 = sadd.s32 %s547, %s548
        %s550 = smul.addr %s549, 4
        %s551 = scalar_lea.vmem %s1, %s550
        %p552 = pneg %p99
        %p553 = pneg %p96
        %p554 = scmp.lt.s32.totalorder %s34, 1
        %s555 = scalar_select %p554, %s34, 1
        %p556 = scmp.lt.s32.totalorder %s36, 0
        %s557 = scalar_select %p556, %s36, 0
        %s558 = smul.addr %s555, 4
        %s559 = sadd.s32 %s557, %s558
        %s560 = smul.addr %s559, 4
        %s561 = scalar_lea.vmem %s2, %s560
        %p562 = pneg %p127
        %p563 = pneg %p124
        %p564 = scmp.lt.s32.totalorder %s34, 1
        %s565 = scalar_select %p564, %s34, 1
        %p566 = scmp.lt.s32.totalorder %s36, 0
        %s567 = scalar_select %p566, %s36, 0
        %s568 = smul.addr %s565, 4
        %s569 = sadd.s32 %s567, %s568
        %s570 = smul.addr %s569, 4
        %s571 = scalar_lea.vmem %s3, %s570
        %p572 = pneg %p155
        %p573 = pneg %p152
        %p574 = scmp.lt.s32.totalorder %s34, 1
        %s575 = scalar_select %p574, %s34, 1
        %p576 = scmp.lt.s32.totalorder %s35, 0
        %s577 = scalar_select %p576, %s35, 0
        %p578 = scmp.lt.s32.totalorder %s36, 0
        %s579 = scalar_select %p578, %s36, 0
        %s580 = sadd.s32 %s579, %s577
        %s581 = sadd.s32 %s580, %s575
        %s582 = smul.addr %s581, 4
        %s583 = scalar_lea.vmem %s4, %s582
        %p584 = pneg %p185
        %p585 = pneg %p182
        %p586 = pneg %p206
        %p587 = pneg %p203
        %p588 = pneg %p227
        %p589 = pneg %p224
        %p590 = pneg %p248
        %p591 = pneg %p245
        %p592 = pneg %p269
        %p593 = pneg %p266
        %p594 = pneg %p290
        %p595 = pneg %p287
        %p596 = pneg %p311
        %p597 = pneg %p308
        %p598 = pneg %p332
        %p599 = pneg %p329
        %p600 = pneg %p353
        %p601 = pneg %p350
        %p602 = pneg %p374
        %p603 = pneg %p371
        %p604 = pneg %p395
        %p605 = pneg %p392
        %p606 = pneg %p423
        %p607 = pneg %p420
        %s608 = sand.u32 %s410, 1
        %s609 = scalar_lea.sflag [#allocation6], %s608
        %s610 = sand.u32 %s410, 1
        %s611 = smul.addr %s610, 8
        %s612 = scalar_lea.vmem [#allocation5], %s611
        %p613 = scmp.lt.s32.totalorder %s34, 1
        %s614 = scalar_select %p613, %s34, 1
        %p615 = scmp.lt.s32.totalorder %s35, 0
        %s616 = scalar_select %p615, %s35, 0
        %s617 = sadd.s32 %s616, %s614
        %s618 = smul.addr %s617, 4
        %s619 = scalar_lea.vmem %s0, %s618
        %p620 = scmp.lt.s32.totalorder %s34, 1
        %s621 = scalar_select %p620, %s34, 1
        %p622 = scmp.lt.s32.totalorder %s35, 0
        %s623 = scalar_select %p622, %s35, 0
        %s624 = smul.addr %s621, 4
        %s625 = sadd.s32 %s623, %s624
        %s626 = smul.addr %s625, 4
        %s627 = scalar_lea.vmem %s1, %s626
        %p628 = scmp.lt.s32.totalorder %s34, 1
        %s629 = scalar_select %p628, %s34, 1
        %p630 = scmp.lt.s32.totalorder %s36, 0
        %s631 = scalar_select %p630, %s36, 0
        %s632 = smul.addr %s629, 4
        %s633 = sadd.s32 %s631, %s632
        %s634 = smul.addr %s633, 4
        %s635 = scalar_lea.vmem %s2, %s634
        %p636 = scmp.lt.s32.totalorder %s34, 1
        %s637 = scalar_select %p636, %s34, 1
        %p638 = scmp.lt.s32.totalorder %s36, 0
        %s639 = scalar_select %p638, %s36, 0
        %s640 = smul.addr %s637, 4
        %s641 = sadd.s32 %s639, %s640
        %s642 = smul.addr %s641, 4
        %s643 = scalar_lea.vmem %s3, %s642
        %p644 = scmp.lt.s32.totalorder %s34, 1
        %s645 = scalar_select %p644, %s34, 1
        %p646 = scmp.lt.s32.totalorder %s35, 0
        %s647 = scalar_select %p646, %s35, 0
        %p648 = scmp.lt.s32.totalorder %s36, 0
        %s649 = scalar_select %p648, %s36, 0
        %s650 = sadd.s32 %s649, %s647
        %s651 = sadd.s32 %s650, %s645
        %s652 = smul.addr %s651, 4
        %s653 = scalar_lea.vmem %s4, %s652
        %p655 = scmp.eq.s32.totalorder %s36, 0
        // Predicated region
        $region81: #{encoder_layer.3} parent=79 // pred_check
          %p656 = pneg %p655
        $region82: #{encoder_layer.3} parent=79 // pred_check_branch
          %658 = sbr.rel (%p656) target = $region84
        $region83: #{encoder_layer.3} parent=79 // pred_region
          %vm659 = vcmask 7168
          %660 = vst.msk [vmem:[#allocation2] sm:$0xff] %vm659, -1e+30
          %661 = vst.msk [vmem:[#allocation2 + $0x8] sm:$0xff] %vm659, -1e+30
          %662 = vst.msk [vmem:[#allocation2 + $0x10] sm:$0xff] %vm659, -1e+30
          %663 = vst.msk [vmem:[#allocation2 + $0x18] sm:$0xff] %vm659, -1e+30
          %664 = vst.msk [vmem:[#allocation3] sm:$0xff] %vm659, 0.0
          %665 = vst.msk [vmem:[#allocation3 + $0x8] sm:$0xff] %vm659, 0.0
          %666 = vst.msk [vmem:[#allocation3 + $0x10] sm:$0xff] %vm659, 0.0
          %667 = vst.msk [vmem:[#allocation3 + $0x18] sm:$0xff] %vm659, 0.0
          %vm668 = vcmask 64512
          %669 = vst.msk [vmem:[#allocation4] sm:$0xff] %vm668, 0.0
          %670 = vst.msk [vmem:[#allocation4 + $0x8] sm:$0xff] %vm668, 0.0
          %671 = vst.msk [vmem:[#allocation4 + $0x10] sm:$0xff] %vm668, 0.0
          %672 = vst.msk [vmem:[#allocation4 + $0x18] sm:$0xff] %vm668, 0.0
        $region84: #{encoder_layer.3} parent=79 // pred_fallthru
          _
        %v673 = vld [vmem:[%s627] sm:$0xf]
        %v674 = vld [vmem:[%s627 + $0x4] sm:$0xf]
        %v675 = vld [vmem:[%s627 + $0x8] sm:$0xf]
        %v676 = vld [vmem:[%s627 + $0xc] sm:$0xf]
        %v677 = vld [vmem:[%s635] sm:$0xf]
        %v678 = vld [vmem:[%s635 + $0x4] sm:$0xf]
        %v679 = vld [vmem:[%s635 + $0x8] sm:$0xf]
        %v680 = vld [vmem:[%s635 + $0xc] sm:$0xf]
        %v681 = vld [vmem:[%s643] sm:$0xf]
        %v682 = vld [vmem:[%s643 + $0x4] sm:$0xf]
        %v683 = vld [vmem:[%s643 + $0x8] sm:$0xf]
        %v684 = vld [vmem:[%s643 + $0xc] sm:$0xf]
        %v685 = vld [vmem:[%s653] sm:$0xf]
        %v686 = vunpack.c.l.bf16 %v685
        %vm687 = vcmask 64512
        %v689 = vsel %vm687, %v673, 0
        %v692 = vsel %vm687, %v677, 0
        %694 = vmatprep.subr.bf16.mxu0 0
        %695 = vmatpush1.bf16.xpose.msra.mxu0 %v692
        %696 = vmatprep.subr.bf16.mxu0 0
        %697 = vmatpush1.bf16.xpose.msra.mxu0 0
        %698 = vmatprep.subr.bf16.mxu0 0
        %699 = vmatpush1.bf16.xpose.msra.mxu0 0
        %700 = vmatprep.subr.bf16.mxu0 0
        %701 = vmatpush1.bf16.xpose.msra.mxu0 0
        %702 = vmatprep.subr.bf16.mxu0 0
        %703 = vmatpush1.bf16.xpose.msra.mxu0 0
        %704 = vmatprep.subr.bf16.mxu0 0
        %705 = vmatpush1.bf16.xpose.msra.mxu0 0
        %706 = vmatprep.subr.bf16.mxu0 0
        %707 = vmatpush1.bf16.xpose.msra.mxu0 0
        %708 = vmatprep.subr.bf16.mxu0 0
        %709 = vmatpush1.bf16.xpose.msra.mxu0 0
        %710 = vmatprep.subr.bf16.mxu0 0
        %711 = vmatpush1.bf16.xpose.msra.mxu0 0
        %712 = vmatprep.subr.bf16.mxu0 0
        %713 = vmatpush1.bf16.xpose.msra.mxu0 0
        %714 = vmatprep.subr.bf16.mxu0 0
        %715 = vmatpush1.bf16.xpose.msra.mxu0 0
        %716 = vmatprep.subr.bf16.mxu0 0
        %717 = vmatpush1.bf16.xpose.msra.mxu0 0
        %718 = vmatprep.subr.bf16.mxu0 0
        %719 = vmatpush1.bf16.xpose.msra.mxu0 0
        %720 = vmatprep.subr.bf16.mxu0 0
        %721 = vmatpush1.bf16.xpose.msra.mxu0 0
        %722 = vmatprep.subr.bf16.mxu0 0
        %723 = vmatpush1.bf16.xpose.msra.mxu0 0
        %724 = vmatprep.subr.bf16.mxu0 0
        %725 = vmatpush1.bf16.xpose.msra.mxu0 0
        %726 = vmatprep.mubr.bf16.mxu0 0
        %727 = vmatmul.mubr.bf16.gmra.mrb[0].mxu0 %v689
        %v728 = vpop.f32.mrb[0].mxu0
        %v729 = vadd.f32 %v686, %v728
        %v730 = vpop.f32.mrb[0].mxu0
        %v731 = vpop.f32.mrb[0].mxu0
        %v732 = vpop.f32.mrb[0].mxu0
        %733 = vdwg.mxu0
        %v735 = vsel %vm687, %v674, 0
        %v738 = vsel %vm687, %v678, 0
        %740 = vmatprep.subr.bf16.mxu0 0
        %741 = vmatpush1.bf16.xpose.msra.mxu0 %v738
        %742 = vmatprep.subr.bf16.mxu0 0
        %743 = vmatpush1.bf16.xpose.msra.mxu0 0
        %744 = vmatprep.subr.bf16.mxu0 0
        %745 = vmatpush1.bf16.xpose.msra.mxu0 0
        %746 = vmatprep.subr.bf16.mxu0 0
        %747 = vmatpush1.bf16.xpose.msra.mxu0 0
        %748 = vmatprep.subr.bf16.mxu0 0
        %749 = vmatpush1.bf16.xpose.msra.mxu0 0
        %750 = vmatprep.subr.bf16.mxu0 0
        %751 = vmatpush1.bf16.xpose.msra.mxu0 0
        %752 = vmatprep.subr.bf16.mxu0 0
        %753 = vmatpush1.bf16.xpose.msra.mxu0 0
        %754 = vmatprep.subr.bf16.mxu0 0
        %755 = vmatpush1.bf16.xpose.msra.mxu0 0
        %756 = vmatprep.subr.bf16.mxu0 0
        %757 = vmatpush1.bf16.xpose.msra.mxu0 0
        %758 = vmatprep.subr.bf16.mxu0 0
        %759 = vmatpush1.bf16.xpose.msra.mxu0 0
        %760 = vmatprep.subr.bf16.mxu0 0
        %761 = vmatpush1.bf16.xpose.msra.mxu0 0
        %762 = vmatprep.subr.bf16.mxu0 0
        %763 = vmatpush1.bf16.xpose.msra.mxu0 0
        %764 = vmatprep.subr.bf16.mxu0 0
        %765 = vmatpush1.bf16.xpose.msra.mxu0 0
        %766 = vmatprep.subr.bf16.mxu0 0
        %767 = vmatpush1.bf16.xpose.msra.mxu0 0
        %768 = vmatprep.subr.bf16.mxu0 0
        %769 = vmatpush1.bf16.xpose.msra.mxu0 0
        %770 = vmatprep.subr.bf16.mxu0 0
        %771 = vmatpush1.bf16.xpose.msra.mxu0 0
        %772 = vmatprep.mubr.bf16.mxu0 0
        %773 = vmatmul.mubr.bf16.gmra.mrb[0].mxu0 %v735
        %v774 = vpop.f32.mrb[0].mxu0
        %v775 = vadd.f32 %v686, %v774
        %v776 = vpop.f32.mrb[0].mxu0
        %v777 = vpop.f32.mrb[0].mxu0
        %v778 = vpop.f32.mrb[0].mxu0
        %779 = vdwg.mxu0
        %v781 = vsel %vm687, %v675, 0
        %v784 = vsel %vm687, %v679, 0
        %786 = vmatprep.subr.bf16.mxu0 0
        %787 = vmatpush1.bf16.xpose.msra.mxu0 %v784
        %788 = vmatprep.subr.bf16.mxu0 0
        %789 = vmatpush1.bf16.xpose.msra.mxu0 0
        %790 = vmatprep.subr.bf16.mxu0 0
        %791 = vmatpush1.bf16.xpose.msra.mxu0 0
        %792 = vmatprep.subr.bf16.mxu0 0
        %793 = vmatpush1.bf16.xpose.msra.mxu0 0
        %794 = vmatprep.subr.bf16.mxu0 0
        %795 = vmatpush1.bf16.xpose.msra.mxu0 0
        %796 = vmatprep.subr.bf16.mxu0 0
        %797 = vmatpush1.bf16.xpose.msra.mxu0 0
        %798 = vmatprep.subr.bf16.mxu0 0
        %799 = vmatpush1.bf16.xpose.msra.mxu0 0
        %800 = vmatprep.subr.bf16.mxu0 0
        %801 = vmatpush1.bf16.xpose.msra.mxu0 0
        %802 = vmatprep.subr.bf16.mxu0 0
        %803 = vmatpush1.bf16.xpose.msra.mxu0 0
        %804 = vmatprep.subr.bf16.mxu0 0
        %805 = vmatpush1.bf16.xpose.msra.mxu0 0
        %806 = vmatprep.subr.bf16.mxu0 0
        %807 = vmatpush1.bf16.xpose.msra.mxu0 0
        %808 = vmatprep.subr.bf16.mxu0 0
        %809 = vmatpush1.bf16.xpose.msra.mxu0 0
        %810 = vmatprep.subr.bf16.mxu0 0
        %811 = vmatpush1.bf16.xpose.msra.mxu0 0
        %812 = vmatprep.subr.bf16.mxu0 0
        %813 = vmatpush1.bf16.xpose.msra.mxu0 0
        %814 = vmatprep.subr.bf16.mxu0 0
        %815 = vmatpush1.bf16.xpose.msra.mxu0 0
        %816 = vmatprep.subr.bf16.mxu0 0
        %817 = vmatpush1.bf16.xpose.msra.mxu0 0
        %818 = vmatprep.mubr.bf16.mxu0 0
        %819 = vmatmul.mubr.bf16.gmra.mrb[0].mxu0 %v781
        %v820 = vpop.f32.mrb[0].mxu0
        %v821 = vadd.f32 %v686, %v820
        %v822 = vpop.f32.mrb[0].mxu0
        %v823 = vpop.f32.mrb[0].mxu0
        %v824 = vpop.f32.mrb[0].mxu0
        %825 = vdwg.mxu0
        %v827 = vsel %vm687, %v676, 0
        %v830 = vsel %vm687, %v680, 0
        %832 = vmatprep.subr.bf16.mxu0 0
        %833 = vmatpush1.bf16.xpose.msra.mxu0 %v830
        %834 = vmatprep.subr.bf16.mxu0 0
        %835 = vmatpush1.bf16.xpose.msra.mxu0 0
        %836 = vmatprep.subr.bf16.mxu0 0
        %837 = vmatpush1.bf16.xpose.msra.mxu0 0
        %838 = vmatprep.subr.bf16.mxu0 0
        %839 = vmatpush1.bf16.xpose.msra.mxu0 0
        %840 = vmatprep.subr.bf16.mxu0 0
        %841 = vmatpush1.bf16.xpose.msra.mxu0 0
        %842 = vmatprep.subr.bf16.mxu0 0
        %843 = vmatpush1.bf16.xpose.msra.mxu0 0
        %844 = vmatprep.subr.bf16.mxu0 0
        %845 = vmatpush1.bf16.xpose.msra.mxu0 0
        %846 = vmatprep.subr.bf16.mxu0 0
        %847 = vmatpush1.bf16.xpose.msra.mxu0 0
        %848 = vmatprep.subr.bf16.mxu0 0
        %849 = vmatpush1.bf16.xpose.msra.mxu0 0
        %850 = vmatprep.subr.bf16.mxu0 0
        %851 = vmatpush1.bf16.xpose.msra.mxu0 0
        %852 = vmatprep.subr.bf16.mxu0 0
        %853 = vmatpush1.bf16.xpose.msra.mxu0 0
        %854 = vmatprep.subr.bf16.mxu0 0
        %855 = vmatpush1.bf16.xpose.msra.mxu0 0
        %856 = vmatprep.subr.bf16.mxu0 0
        %857 = vmatpush1.bf16.xpose.msra.mxu0 0
        %858 = vmatprep.subr.bf16.mxu0 0
        %859 = vmatpush1.bf16.xpose.msra.mxu0 0
        %860 = vmatprep.subr.bf16.mxu0 0
        %861 = vmatpush1.bf16.xpose.msra.mxu0 0
        %862 = vmatprep.subr.bf16.mxu0 0
        %863 = vmatpush1.bf16.xpose.msra.mxu0 0
        %864 = vmatprep.mubr.bf16.mxu0 0
        %865 = vmatmul.mubr.bf16.gmra.mrb[0].mxu0 %v827
        %v866 = vpop.f32.mrb[0].mxu0
        %v867 = vadd.f32 %v686, %v866
        %v868 = vpop.f32.mrb[0].mxu0
        %v869 = vpop.f32.mrb[0].mxu0
        %v870 = vpop.f32.mrb[0].mxu0
        %871 = vdwg.mxu0
        %v872 = vld [vmem:[#allocation2] sm:$0xff]
        %v873 = vld [vmem:[#allocation2 + $0x8] sm:$0xff]
        %v874 = vld [vmem:[#allocation2 + $0x10] sm:$0xff]
        %v875 = vld [vmem:[#allocation2 + $0x18] sm:$0xff]
        %v876 = vsel %vm687, %v729, -inf
        %877 = vmax.xlane.f32.xlu0 %v876
        %v878 = vpop.xlane.xlu0 %877
        %v879 = vsel %vm687, %v775, -inf
        %880 = vmax.xlane.f32.xlu0 %v879
        %v881 = vpop.xlane.xlu0 %880
        %v882 = vsel %vm687, %v821, -inf
        %883 = vmax.xlane.f32.xlu0 %v882
        %v884 = vpop.xlane.xlu0 %883
        %v885 = vsel %vm687, %v867, -inf
        %886 = vmax.xlane.f32.xlu0 %v885
        %v887 = vpop.xlane.xlu0 %886
        %v888 = vmax.f32 %v872, %v878
        %v889 = vmax.f32 %v873, %v881
        %v890 = vmax.f32 %v874, %v884
        %v891 = vmax.f32 %v875, %v887
        %v892 = vsub.f32 %v872, %v888
        %v893 = vsub.f32 %v873, %v889
        %v894 = vsub.f32 %v874, %v890
        %v895 = vsub.f32 %v875, %v891
        %v896 = vmul.f32 %v892, 1.442695
        %v897 = vpow.pop %v896
        %v898 = vmul.f32 %v893, 1.442695
        %v899 = vpow.pop %v898
        %v900 = vmul.f32 %v894, 1.442695
        %v901 = vpow.pop %v900
        %v902 = vmul.f32 %v895, 1.442695
        %v903 = vpow.pop %v902
        %905 = vset.pattern.permute.xlu0 0
        %906 = vperm.xlu0 %905, %v888
        %v907 = vpop.permute.xlu0 %906
        %910 = vset.pattern.permute.xlu0 0
        %911 = vperm.xlu0 %910, %v889
        %v912 = vpop.permute.xlu0 %911
        %915 = vset.pattern.permute.xlu0 0
        %916 = vperm.xlu0 %915, %v890
        %v917 = vpop.permute.xlu0 %916
        %920 = vset.pattern.permute.xlu0 0
        %921 = vperm.xlu0 %920, %v891
        %v922 = vpop.permute.xlu0 %921
        %v924 = vsub.f32 %v729, %v907
        %v925 = vsub.f32 %v775, %v912
        %v926 = vsub.f32 %v821, %v917
        %v927 = vsub.f32 %v867, %v922
        %v928 = vmul.f32 %v924, 1.442695
        %v929 = vpow.pop %v928
        %v930 = vmul.f32 %v925, 1.442695
        %v931 = vpow.pop %v930
        %v932 = vmul.f32 %v926, 1.442695
        %v933 = vpow.pop %v932
        %v934 = vmul.f32 %v927, 1.442695
        %v935 = vpow.pop %v934
        %v936 = vld [vmem:[#allocation3] sm:$0xff]
        %v937 = vld [vmem:[#allocation3 + $0x8] sm:$0xff]
        %v938 = vld [vmem:[#allocation3 + $0x10] sm:$0xff]
        %v939 = vld [vmem:[#allocation3 + $0x18] sm:$0xff]
        %v940 = vmul.f32 %v897, %v936
        %v941 = vmul.f32 %v899, %v937
        %v942 = vmul.f32 %v901, %v938
        %v943 = vmul.f32 %v903, %v939
        %v944 = vsel %vm687, %v929, 0.0
        %945 = vadd.xlane.f32.xlu0 %v944
        %v946 = vpop.xlane.xlu0 %945
        %v947 = vsel %vm687, %v931, 0.0
        %948 = vadd.xlane.f32.xlu0 %v947
        %v949 = vpop.xlane.xlu0 %948
        %v950 = vsel %vm687, %v933, 0.0
        %951 = vadd.xlane.f32.xlu0 %v950
        %v952 = vpop.xlane.xlu0 %951
        %v953 = vsel %vm687, %v935, 0.0
        %954 = vadd.xlane.f32.xlu0 %v953
        %v955 = vpop.xlane.xlu0 %954
        %v956 = vadd.f32 %v940, %v946
        %v957 = vadd.f32 %v941, %v949
        %v958 = vadd.f32 %v942, %v952
        %v959 = vadd.f32 %v943, %v955
        %vm960 = vcmask 7168
        %961 = vst.msk [vmem:[#allocation3] sm:$0xff] %vm960, %v956
        %962 = vst.msk [vmem:[#allocation3 + $0x8] sm:$0xff] %vm960, %v957
        %963 = vst.msk [vmem:[#allocation3 + $0x10] sm:$0xff] %vm960, %v958
        %964 = vst.msk [vmem:[#allocation3 + $0x18] sm:$0xff] %vm960, %v959
        %v965 = vld [vmem:[#allocation4] sm:$0xff]
        %v966 = vld [vmem:[#allocation4 + $0x8] sm:$0xff]
        %v967 = vld [vmem:[#allocation4 + $0x10] sm:$0xff]
        %v968 = vld [vmem:[#allocation4 + $0x18] sm:$0xff]
        %970 = vset.pattern.permute.xlu0 0
        %971 = vperm.xlu0 %970, %v897
        %v972 = vpop.permute.xlu0 %971
        %975 = vset.pattern.permute.xlu0 0
        %976 = vperm.xlu0 %975, %v899
        %v977 = vpop.permute.xlu0 %976
        %980 = vset.pattern.permute.xlu0 0
        %981 = vperm.xlu0 %980, %v901
        %v982 = vpop.permute.xlu0 %981
        %985 = vset.pattern.permute.xlu0 0
        %986 = vperm.xlu0 %985, %v903
        %v987 = vpop.permute.xlu0 %986
        %v989 = vmul.f32 %v972, %v965
        %v990 = vmul.f32 %v977, %v966
        %v991 = vmul.f32 %v982, %v967
        %v992 = vmul.f32 %v987, %v968
        %v993 = vpack.c.bf16 %v929, %v929
        %v994 = vpack.c.bf16 %v931, %v931
        %v995 = vpack.c.bf16 %v933, %v933
        %v996 = vpack.c.bf16 %v935, %v935
        %v998 = vsel %vm687, %v993, 0
        %vm1000 = vcmask 1043456
        %v1002 = vsel %vm1000, %v681, 0
        %1004 = vmatprep.subr.bf16.mxu0 0
        %1005 = vmatpush1.bf16.msra.mxu0 %v1002
        %1006 = vmatprep.subr.bf16.mxu0 0
        %1007 = vmatpush1.bf16.msra.mxu0 0
        %1008 = vmatprep.subr.bf16.mxu0 0
        %1009 = vmatpush1.bf16.msra.mxu0 0
        %1010 = vmatprep.subr.bf16.mxu0 0
        %1011 = vmatpush1.bf16.msra.mxu0 0
        %1012 = vmatprep.subr.bf16.mxu0 0
        %1013 = vmatpush1.bf16.msra.mxu0 0
        %1014 = vmatprep.subr.bf16.mxu0 0
        %1015 = vmatpush1.bf16.msra.mxu0 0
        %1016 = vmatprep.subr.bf16.mxu0 0
        %1017 = vmatpush1.bf16.msra.mxu0 0
        %1018 = vmatprep.subr.bf16.mxu0 0
        %1019 = vmatpush1.bf16.msra.mxu0 0
        %1020 = vmatprep.subr.bf16.mxu0 0
        %1021 = vmatpush1.bf16.msra.mxu0 0
        %1022 = vmatprep.subr.bf16.mxu0 0
        %1023 = vmatpush1.bf16.msra.mxu0 0
        %1024 = vmatprep.subr.bf16.mxu0 0
        %1025 = vmatpush1.bf16.msra.mxu0 0
        %1026 = vmatprep.subr.bf16.mxu0 0
        %1027 = vmatpush1.bf16.msra.mxu0 0
        %1028 = vmatprep.subr.bf16.mxu0 0
        %1029 = vmatpush1.bf16.msra.mxu0 0
        %1030 = vmatprep.subr.bf16.mxu0 0
        %1031 = vmatpush1.bf16.msra.mxu0 0
        %1032 = vmatprep.subr.bf16.mxu0 0
        %1033 = vmatpush1.bf16.msra.mxu0 0
        %1034 = vmatprep.subr.bf16.mxu0 0
        %1035 = vmatpush1.bf16.msra.mxu0 0
        %1036 = vmatprep.mubr.bf16.mxu0 0
        %1037 = vmatmul.mubr.bf16.gmra.mrb[0].mxu0 %v998
        %v1038 = vpop.f32.mrb[0].mxu0
        %v1039 = vadd.f32 0.0, %v1038
        %v1040 = vpop.f32.mrb[0].mxu0
        %v1041 = vpop.f32.mrb[0].mxu0
        %v1042 = vpop.f32.mrb[0].mxu0
        %1043 = vdwg.mxu0
        %v1045 = vsel %vm687, %v994, 0
        %v1048 = vsel %vm1000, %v682, 0
        %1050 = vmatprep.subr.bf16.mxu0 0
        %1051 = vmatpush1.bf16.msra.mxu0 %v1048
        %1052 = vmatprep.subr.bf16.mxu0 0
        %1053 = vmatpush1.bf16.msra.mxu0 0
        %1054 = vmatprep.subr.bf16.mxu0 0
        %1055 = vmatpush1.bf16.msra.mxu0 0
        %1056 = vmatprep.subr.bf16.mxu0 0
        %1057 = vmatpush1.bf16.msra.mxu0 0
        %1058 = vmatprep.subr.bf16.mxu0 0
        %1059 = vmatpush1.bf16.msra.mxu0 0
        %1060 = vmatprep.subr.bf16.mxu0 0
        %1061 = vmatpush1.bf16.msra.mxu0 0
        %1062 = vmatprep.subr.bf16.mxu0 0
        %1063 = vmatpush1.bf16.msra.mxu0 0
        %1064 = vmatprep.subr.bf16.mxu0 0
        %1065 = vmatpush1.bf16.msra.mxu0 0
        %1066 = vmatprep.subr.bf16.mxu0 0
        %1067 = vmatpush1.bf16.msra.mxu0 0
        %1068 = vmatprep.subr.bf16.mxu0 0
        %1069 = vmatpush1.bf16.msra.mxu0 0
        %1070 = vmatprep.subr.bf16.mxu0 0
        %1071 = vmatpush1.bf16.msra.mxu0 0
        %1072 = vmatprep.subr.bf16.mxu0 0
        %1073 = vmatpush1.bf16.msra.mxu0 0
        %1074 = vmatprep.subr.bf16.mxu0 0
        %1075 = vmatpush1.bf16.msra.mxu0 0
        %1076 = vmatprep.subr.bf16.mxu0 0
        %1077 = vmatpush1.bf16.msra.mxu0 0
        %1078 = vmatprep.subr.bf16.mxu0 0
        %1079 = vmatpush1.bf16.msra.mxu0 0
        %1080 = vmatprep.subr.bf16.mxu0 0
        %1081 = vmatpush1.bf16.msra.mxu0 0
        %1082 = vmatprep.mubr.bf16.mxu0 0
        %1083 = vmatmul.mubr.bf16.gmra.mrb[0].mxu0 %v1045
        %v1084 = vpop.f32.mrb[0].mxu0
        %v1085 = vadd.f32 0.0, %v1084
        %v1086 = vpop.f32.mrb[0].mxu0
        %v1087 = vpop.f32.mrb[0].mxu0
        %v1088 = vpop.f32.mrb[0].mxu0
        %1089 = vdwg.mxu0
        %v1091 = vsel %vm687, %v995, 0
        %v1094 = vsel %vm1000, %v683, 0
        %1096 = vmatprep.subr.bf16.mxu0 0
        %1097 = vmatpush1.bf16.msra.mxu0 %v1094
        %1098 = vmatprep.subr.bf16.mxu0 0
        %1099 = vmatpush1.bf16.msra.mxu0 0
        %1100 = vmatprep.subr.bf16.mxu0 0
        %1101 = vmatpush1.bf16.msra.mxu0 0
        %1102 = vmatprep.subr.bf16.mxu0 0
        %1103 = vmatpush1.bf16.msra.mxu0 0
        %1104 = vmatprep.subr.bf16.mxu0 0
        %1105 = vmatpush1.bf16.msra.mxu0 0
        %1106 = vmatprep.subr.bf16.mxu0 0
        %1107 = vmatpush1.bf16.msra.mxu0 0
        %1108 = vmatprep.subr.bf16.mxu0 0
        %1109 = vmatpush1.bf16.msra.mxu0 0
        %1110 = vmatprep.subr.bf16.mxu0 0
        %1111 = vmatpush1.bf16.msra.mxu0 0
        %1112 = vmatprep.subr.bf16.mxu0 0
        %1113 = vmatpush1.bf16.msra.mxu0 0
        %1114 = vmatprep.subr.bf16.mxu0 0
        %1115 = vmatpush1.bf16.msra.mxu0 0
        %1116 = vmatprep.subr.bf16.mxu0 0
        %1117 = vmatpush1.bf16.msra.mxu0 0
        %1118 = vmatprep.subr.bf16.mxu0 0
        %1119 = vmatpush1.bf16.msra.mxu0 0
        %1120 = vmatprep.subr.bf16.mxu0 0
        %1121 = vmatpush1.bf16.msra.mxu0 0
        %1122 = vmatprep.subr.bf16.mxu0 0
        %1123 = vmatpush1.bf16.msra.mxu0 0
        %1124 = vmatprep.subr.bf16.mxu0 0
        %1125 = vmatpush1.bf16.msra.mxu0 0
        %1126 = vmatprep.subr.bf16.mxu0 0
        %1127 = vmatpush1.bf16.msra.mxu0 0
        %1128 = vmatprep.mubr.bf16.mxu0 0
        %1129 = vmatmul.mubr.bf16.gmra.mrb[0].mxu0 %v1091
        %v1130 = vpop.f32.mrb[0].mxu0
        %v1131 = vadd.f32 0.0, %v1130
        %v1132 = vpop.f32.mrb[0].mxu0
        %v1133 = vpop.f32.mrb[0].mxu0
        %v1134 = vpop.f32.mrb[0].mxu0
        %1135 = vdwg.mxu0
        %v1137 = vsel %vm687, %v996, 0
        %v1140 = vsel %vm1000, %v684, 0
        %1142 = vmatprep.subr.bf16.mxu0 0
        %1143 = vmatpush1.bf16.msra.mxu0 %v1140
        %1144 = vmatprep.subr.bf16.mxu0 0
        %1145 = vmatpush1.bf16.msra.mxu0 0
        %1146 = vmatprep.subr.bf16.mxu0 0
        %1147 = vmatpush1.bf16.msra.mxu0 0
        %1148 = vmatprep.subr.bf16.mxu0 0
        %1149 = vmatpush1.bf16.msra.mxu0 0
        %1150 = vmatprep.subr.bf16.mxu0 0
        %1151 = vmatpush1.bf16.msra.mxu0 0
        %1152 = vmatprep.subr.bf16.mxu0 0
        %1153 = vmatpush1.bf16.msra.mxu0 0
        %1154 = vmatprep.subr.bf16.mxu0 0
        %1155 = vmatpush1.bf16.msra.mxu0 0
        %1156 = vmatprep.subr.bf16.mxu0 0
        %1157 = vmatpush1.bf16.msra.mxu0 0
        %1158 = vmatprep.subr.bf16.mxu0 0
        %1159 = vmatpush1.bf16.msra.mxu0 0
        %1160 = vmatprep.subr.bf16.mxu0 0
        %1161 = vmatpush1.bf16.msra.mxu0 0
        %1162 = vmatprep.subr.bf16.mxu0 0
        %1163 = vmatpush1.bf16.msra.mxu0 0
        %1164 = vmatprep.subr.bf16.mxu0 0
        %1165 = vmatpush1.bf16.msra.mxu0 0
        %1166 = vmatprep.subr.bf16.mxu0 0
        %1167 = vmatpush1.bf16.msra.mxu0 0
        %1168 = vmatprep.subr.bf16.mxu0 0
        %1169 = vmatpush1.bf16.msra.mxu0 0
        %1170 = vmatprep.subr.bf16.mxu0 0
        %1171 = vmatpush1.bf16.msra.mxu0 0
        %1172 = vmatprep.subr.bf16.mxu0 0
        %1173 = vmatpush1.bf16.msra.mxu0 0
        %1174 = vmatprep.mubr.bf16.mxu0 0
        %1175 = vmatmul.mubr.bf16.gmra.mrb[0].mxu0 %v1137
        %v1176 = vpop.f32.mrb[0].mxu0
        %v1177 = vadd.f32 0.0, %v1176
        %v1178 = vpop.f32.mrb[0].mxu0
        %v1179 = vpop.f32.mrb[0].mxu0
        %v1180 = vpop.f32.mrb[0].mxu0
        %1181 = vdwg.mxu0
        %v1182 = vadd.f32 %v989, %v1039
        %v1183 = vadd.f32 %v990, %v1085
        %v1184 = vadd.f32 %v991, %v1131
        %v1185 = vadd.f32 %v992, %v1177
        %1186 = vst.msk [vmem:[#allocation4] sm:$0xff] %vm687, %v1182
        %1187 = vst.msk [vmem:[#allocation4 + $0x8] sm:$0xff] %vm687, %v1183
        %1188 = vst.msk [vmem:[#allocation4 + $0x10] sm:$0xff] %vm687, %v1184
        %1189 = vst.msk [vmem:[#allocation4 + $0x18] sm:$0xff] %vm687, %v1185
        %1190 = vst.msk [vmem:[#allocation2] sm:$0xff] %vm960, %v888
        %1191 = vst.msk [vmem:[#allocation2 + $0x8] sm:$0xff] %vm960, %v889
        %1192 = vst.msk [vmem:[#allocation2 + $0x10] sm:$0xff] %vm960, %v890
        %1193 = vst.msk [vmem:[#allocation2 + $0x18] sm:$0xff] %vm960, %v891
        // Predicated region
        $region85: #{encoder_layer.3} parent=79 // pred_check
          %p1194 = pneg %p655
        $region86: #{encoder_layer.3} parent=79 // pred_check_branch
          %1196 = sbr.rel (%p1194) target = $region88
        $region87: #{encoder_layer.3} parent=79 // pred_region
          %v1197 = vld [vmem:[#allocation3] sm:$0xff]
          %v1198 = vld [vmem:[#allocation3 + $0x8] sm:$0xff]
          %v1199 = vld [vmem:[#allocation3 + $0x10] sm:$0xff]
          %v1200 = vld [vmem:[#allocation3 + $0x18] sm:$0xff]
          %v1201 = vrcp.pop %v1197
          %v1202 = vrcp.pop %v1198
          %v1203 = vrcp.pop %v1199
          %v1204 = vrcp.pop %v1200
          %v1205 = vld [vmem:[#allocation4] sm:$0xff]
          %v1206 = vld [vmem:[#allocation4 + $0x8] sm:$0xff]
          %v1207 = vld [vmem:[#allocation4 + $0x10] sm:$0xff]
          %v1208 = vld [vmem:[#allocation4 + $0x18] sm:$0xff]
          %1210 = vset.pattern.permute.xlu0 0
          %1211 = vperm.xlu0 %1210, %v1201
          %v1212 = vpop.permute.xlu0 %1211
          %1215 = vset.pattern.permute.xlu0 0
          %1216 = vperm.xlu0 %1215, %v1202
          %v1217 = vpop.permute.xlu0 %1216
          %1220 = vset.pattern.permute.xlu0 0
          %1221 = vperm.xlu0 %1220, %v1203
          %v1222 = vpop.permute.xlu0 %1221
          %1225 = vset.pattern.permute.xlu0 0
          %1226 = vperm.xlu0 %1225, %v1204
          %v1227 = vpop.permute.xlu0 %1226
          %v1229 = vmul.f32 %v1205, %v1212
          %v1230 = vmul.f32 %v1206, %v1217
          %v1231 = vmul.f32 %v1207, %v1222
          %v1232 = vmul.f32 %v1208, %v1227
          %1234 = vrot.lane.b32.xlu0 %v1230, 8
          %v1235 = vpop.permute.xlu0 %1234
          %1238 = vrot.lane.b32.xlu0 %v1231, 16
          %v1239 = vpop.permute.xlu0 %1238
          %1242 = vrot.lane.b32.xlu0 %v1232, 24
          %v1243 = vpop.permute.xlu0 %1242
          %v1245 = vsel %vm687, %v1229, %v1235
          %vm1246 = vcmask 130048
          %v1247 = vsel %vm1246, %v1245, %v1239
          %vm1248 = vcmask 195584
          %v1249 = vsel %vm1248, %v1247, %v1243
          %v1250 = vpack.c.bf16 %v1249, %v1249
          %v1251 = vld [vmem:[%s5] sm:$0xf]
          %v1252 = vld [vmem:[%s5 + $0x4] sm:$0xf]
          %v1253 = vld [vmem:[%s5 + $0x8] sm:$0xf]
          %v1254 = vld [vmem:[%s5 + $0xc] sm:$0xf]
          %v1255 = vld [vmem:[%s6] sm:$0x1]
          %v1257 = vlaneseq
          %v1258 = vshrl.u32 %v1257, 7
          %v1259 = vsub.s32 0, %v1258
          %v1260 = vrot.slane %v1255, %v1259
          %v1266 = vunpack.c.l.b16 %v1251
          %v1267 = vunpack.c.l.b16 %v1252
          %v1268 = vunpack.c.l.b16 %v1253
          %v1269 = vunpack.c.l.b16 %v1254
          %v1270 = vpack.c.b16 %v1267, %v1266
          %v1271 = vpack.c.b16 %v1269, %v1268
          %vm1274 = vcmask 261120
          %v1276 = vsel %vm1274, %v1250, 0
          %1278 = vmatprep.subr.bf16.mxu0 0
          %1279 = vmatpush1.bf16.msra.mxu0 %v1270
          %1280 = vmatprep.subr.bf16.mxu0 0
          %1281 = vmatpush1.bf16.msra.mxu0 %v1271
          %1282 = vmatprep.subr.bf16.mxu0 0
          %1283 = vmatpush1.bf16.msra.mxu0 0
          %1284 = vmatprep.subr.bf16.mxu0 0
          %1285 = vmatpush1.bf16.msra.mxu0 0
          %1286 = vmatprep.subr.bf16.mxu0 0
          %1287 = vmatpush1.bf16.msra.mxu0 0
          %1288 = vmatprep.subr.bf16.mxu0 0
          %1289 = vmatpush1.bf16.msra.mxu0 0
          %1290 = vmatprep.subr.bf16.mxu0 0
          %1291 = vmatpush1.bf16.msra.mxu0 0
          %1292 = vmatprep.subr.bf16.mxu0 0
          %1293 = vmatpush1.bf16.msra.mxu0 0
          %1294 = vmatprep.subr.bf16.mxu0 0
          %1295 = vmatpush1.bf16.msra.mxu0 0
          %1296 = vmatprep.subr.bf16.mxu0 0
          %1297 = vmatpush1.bf16.msra.mxu0 0
          %1298 = vmatprep.subr.bf16.mxu0 0
          %1299 = vmatpush1.bf16.msra.mxu0 0
          %1300 = vmatprep.subr.bf16.mxu0 0
          %1301 = vmatpush1.bf16.msra.mxu0 0
          %1302 = vmatprep.subr.bf16.mxu0 0
          %1303 = vmatpush1.bf16.msra.mxu0 0
          %1304 = vmatprep.subr.bf16.mxu0 0
          %1305 = vmatpush1.bf16.msra.mxu0 0
          %1306 = vmatprep.subr.bf16.mxu0 0
          %1307 = vmatpush1.bf16.msra.mxu0 0
          %1308 = vmatprep.subr.bf16.mxu0 0
          %1309 = vmatpush1.bf16.msra.mxu0 0
          %1310 = vmatprep.mubr.bf16.mxu0 0
          %1311 = vmatmul.mubr.bf16.gmra.mrb[0].mxu0 %v1276
          %v1312 = vpop.f32.mrb[0].mxu0
          %v1313 = vadd.f32 %v1260, %v1312
          %v1314 = vpop.f32.mrb[0].mxu0
          %v1315 = vpop.f32.mrb[0].mxu0
          %v1316 = vpop.f32.mrb[0].mxu0
          %1317 = vdwg.mxu0
          %v1318 = vld [vmem:[%s619] sm:$0xf]
          %v1319 = vunpack.c.l.bf16 %v1318
          %v1320 = vadd.f32 %v1313, %v1319
          %v1321 = vld [vmem:[%s7] sm:$0x1]
          %v1322 = vld [vmem:[%s8] sm:$0x1]
          %v1323 = vsel %vm1274, %v1320, 0.0
          %1324 = vadd.xlane.f32.xlu0 %v1323
          %v1325 = vpop.xlane.xlu0 %1324
          %v1326 = vrcp.pop 32.0
          %v1327 = vmul.f32 %v1325, %v1326
          %v1328 = vsub.f32 %v1320, %v1327
          %v1329 = vmul.f32 %v1328, %v1328
          %v1330 = vsel %vm1274, %v1329, 0.0
          %1331 = vadd.xlane.f32.xlu0 %v1330
          %v1332 = vpop.xlane.xlu0 %1331
          %v1333 = vmul.f32 %v1332, %v1326
          %v1335 = vlaneseq
          %v1336 = vshrl.u32 %v1335, 7
          %v1337 = vsub.s32 0, %v1336
          %v1338 = vrot.slane %v1321, %v1337
          %v1340 = vmul.f32 %v1338, %v1328
          %v1341 = vadd.f32 %v1333, 1e-12
          %v1342 = vrsqrt.pop %v1341
          %v1343 = vmul.f32 %v1340, %v1342
          %v1345 = vlaneseq
          %v1346 = vshrl.u32 %v1345, 7
          %v1347 = vsub.s32 0, %v1346
          %v1348 = vrot.slane %v1322, %v1347
          %v1350 = vadd.f32 %v1343, %v1348
          %v1351 = vpack.c.bf16 %v1350, %v1350
          %v1352 = vld [vmem:[%s9] sm:$0xf]
          %v1353 = vld [vmem:[%s9 + $0x4] sm:$0xf]
          %v1354 = vld [vmem:[%s9 + $0x8] sm:$0xf]
          %v1355 = vld [vmem:[%s9 + $0xc] sm:$0xf]
          %v1356 = vld [vmem:[%s10] sm:$0x1]
          %v1358 = vlaneseq
          %v1359 = vshrl.u32 %v1358, 7
          %v1360 = vsub.s32 0, %v1359
          %v1361 = vrot.slane %v1356, %v1360
          %v1367 = vunpack.c.l.b16 %v1352
          %v1368 = vunpack.c.l.b16 %v1353
          %v1369 = vunpack.c.l.b16 %v1354
          %v1370 = vunpack.c.l.b16 %v1355
          %v1371 = vpack.c.b16 %v1368, %v1367
          %v1372 = vpack.c.b16 %v1370, %v1369
          %v1376 = vsel %vm1274, %v1351, 0
          %1378 = vmatprep.subr.bf16.mxu0 0
          %1379 = vmatpush1.bf16.msra.mxu0 %v1371
          %1380 = vmatprep.subr.bf16.mxu0 0
          %1381 = vmatpush1.bf16.msra.mxu0 %v1372
          %1382 = vmatprep.subr.bf16.mxu0 0
          %1383 = vmatpush1.bf16.msra.mxu0 0
          %1384 = vmatprep.subr.bf16.mxu0 0
          %1385 = vmatpush1.bf16.msra.mxu0 0
          %1386 = vmatprep.subr.bf16.mxu0 0
          %1387 = vmatpush1.bf16.msra.mxu0 0
          %1388 = vmatprep.subr.bf16.mxu0 0
          %1389 = vmatpush1.bf16.msra.mxu0 0
          %1390 = vmatprep.subr.bf16.mxu0 0
          %1391 = vmatpush1.bf16.msra.mxu0 0
          %1392 = vmatprep.subr.bf16.mxu0 0
          %1393 = vmatpush1.bf16.msra.mxu0 0
          %1394 = vmatprep.subr.bf16.mxu0 0
          %1395 = vmatpush1.bf16.msra.mxu0 0
          %1396 = vmatprep.subr.bf16.mxu0 0
          %1397 = vmatpush1.bf16.msra.mxu0 0
          %1398 = vmatprep.subr.bf16.mxu0 0
          %1399 = vmatpush1.bf16.msra.mxu0 0
          %1400 = vmatprep.subr.bf16.mxu0 0
          %1401 = vmatpush1.bf16.msra.mxu0 0
          %1402 = vmatprep.subr.bf16.mxu0 0
          %1403 = vmatpush1.bf16.msra.mxu0 0
          %1404 = vmatprep.subr.bf16.mxu0 0
          %1405 = vmatpush1.bf16.msra.mxu0 0
          %1406 = vmatprep.subr.bf16.mxu0 0
          %1407 = vmatpush1.bf16.msra.mxu0 0
          %1408 = vmatprep.subr.bf16.mxu0 0
          %1409 = vmatpush1.bf16.msra.mxu0 0
          %1410 = vmatprep.mubr.bf16.mxu0 0
          %1411 = vmatmul.mubr.bf16.gmra.mrb[0].mxu0 %v1376
          %v1412 = vpop.f32.mrb[0].mxu0
          %v1413 = vadd.f32 %v1361, %v1412
          %v1414 = vpop.f32.mrb[0].mxu0
          %v1415 = vpop.f32.mrb[0].mxu0
          %v1416 = vpop.f32.mrb[0].mxu0
          %1417 = vdwg.mxu0
          %v1418 = vmax.f32 %v1413, 0.0
          %v1419 = vpack.c.bf16 %v1418, %v1418
          %v1420 = vld [vmem:[%s11] sm:$0xf]
          %v1421 = vld [vmem:[%s11 + $0x4] sm:$0xf]
          %v1422 = vld [vmem:[%s11 + $0x8] sm:$0xf]
          %v1423 = vld [vmem:[%s11 + $0xc] sm:$0xf]
          %v1424 = vld [vmem:[%s11 + $0x10] sm:$0xf]
          %v1425 = vld [vmem:[%s11 + $0x14] sm:$0xf]
          %v1426 = vld [vmem:[%s11 + $0x18] sm:$0xf]
          %v1427 = vld [vmem:[%s11 + $0x1c] sm:$0xf]
          %v1428 = vld [vmem:[%s12] sm:$0x1]
          %v1430 = vlaneseq
          %v1431 = vshrl.u32 %v1430, 7
          %v1432 = vsub.s32 0, %v1431
          %v1433 = vrot.slane %v1428, %v1432
          %v1443 = vunpack.c.l.b16 %v1420
          %v1444 = vunpack.c.l.b16 %v1421
          %v1445 = vunpack.c.l.b16 %v1422
          %v1446 = vunpack.c.l.b16 %v1423
          %v1447 = vunpack.c.l.b16 %v1424
          %v1448 = vunpack.c.l.b16 %v1425
          %v1449 = vunpack.c.l.b16 %v1426
          %v1450 = vunpack.c.l.b16 %v1427
          %v1451 = vpack.c.b16 %v1444, %v1443
          %v1452 = vpack.c.b16 %v1446, %v1445
          %v1453 = vpack.c.b16 %v1448, %v1447
          %v1454 = vpack.c.b16 %v1450, %v1449
          %vm1459 = vcmask 523264
          %v1461 = vsel %vm1459, %v1419, 0
          %1463 = vmatprep.subr.bf16.mxu0 0
          %1464 = vmatpush1.bf16.msra.mxu0 %v1451
          %1465 = vmatprep.subr.bf16.mxu0 0
          %1466 = vmatpush1.bf16.msra.mxu0 %v1452
          %1467 = vmatprep.subr.bf16.mxu0 0
          %1468 = vmatpush1.bf16.msra.mxu0 %v1453
          %1469 = vmatprep.subr.bf16.mxu0 0
          %1470 = vmatpush1.bf16.msra.mxu0 %v1454
          %1471 = vmatprep.subr.bf16.mxu0 0
          %1472 = vmatpush1.bf16.msra.mxu0 0
          %1473 = vmatprep.subr.bf16.mxu0 0
          %1474 = vmatpush1.bf16.msra.mxu0 0
          %1475 = vmatprep.subr.bf16.mxu0 0
          %1476 = vmatpush1.bf16.msra.mxu0 0
          %1477 = vmatprep.subr.bf16.mxu0 0
          %1478 = vmatpush1.bf16.msra.mxu0 0
          %1479 = vmatprep.subr.bf16.mxu0 0
          %1480 = vmatpush1.bf16.msra.mxu0 0
          %1481 = vmatprep.subr.bf16.mxu0 0
          %1482 = vmatpush1.bf16.msra.mxu0 0
          %1483 = vmatprep.subr.bf16.mxu0 0
          %1484 = vmatpush1.bf16.msra.mxu0 0
          %1485 = vmatprep.subr.bf16.mxu0 0
          %1486 = vmatpush1.bf16.msra.mxu0 0
          %1487 = vmatprep.subr.bf16.mxu0 0
          %1488 = vmatpush1.bf16.msra.mxu0 0
          %1489 = vmatprep.subr.bf16.mxu0 0
          %1490 = vmatpush1.bf16.msra.mxu0 0
          %1491 = vmatprep.subr.bf16.mxu0 0
          %1492 = vmatpush1.bf16.msra.mxu0 0
          %1493 = vmatprep.subr.bf16.mxu0 0
          %1494 = vmatpush1.bf16.msra.mxu0 0
          %1495 = vmatprep.mubr.bf16.mxu0 0
          %1496 = vmatmul.mubr.bf16.gmra.mrb[0].mxu0 %v1461
          %v1497 = vpop.f32.mrb[0].mxu0
          %v1498 = vadd.f32 %v1433, %v1497
          %v1499 = vpop.f32.mrb[0].mxu0
          %v1500 = vpop.f32.mrb[0].mxu0
          %v1501 = vpop.f32.mrb[0].mxu0
          %1502 = vdwg.mxu0
          %v1503 = vadd.f32 %v1498, %v1350
          %v1504 = vld [vmem:[%s13] sm:$0x1]
          %v1505 = vld [vmem:[%s14] sm:$0x1]
          %v1506 = vsel %vm1274, %v1503, 0.0
          %1507 = vadd.xlane.f32.xlu0 %v1506
          %v1508 = vpop.xlane.xlu0 %1507
          %v1509 = vmul.f32 %v1508, %v1326
          %v1510 = vsub.f32 %v1503, %v1509
          %v1511 = vmul.f32 %v1510, %v1510
          %v1512 = vsel %vm1274, %v1511, 0.0
          %1513 = vadd.xlane.f32.xlu0 %v1512
          %v1514 = vpop.xlane.xlu0 %1513
          %v1515 = vmul.f32 %v1514, %v1326
          %v1517 = vlaneseq
          %v1518 = vshrl.u32 %v1517, 7
          %v1519 = vsub.s32 0, %v1518
          %v1520 = vrot.slane %v1504, %v1519
          %v1522 = vmul.f32 %v1520, %v1510
          %v1523 = vadd.f32 %v1515, 1e-12
          %v1524 = vrsqrt.pop %v1523
          %v1525 = vmul.f32 %v1522, %v1524
          %v1527 = vlaneseq
          %v1528 = vshrl.u32 %v1527, 7
          %v1529 = vsub.s32 0, %v1528
          %v1530 = vrot.slane %v1505, %v1529
          %v1532 = vadd.f32 %v1525, %v1530
          %1533 = vst.msk [vmem:[%s612] sm:$0xff] %vm1274, %v1532
        $region88: #{encoder_layer.3} parent=79 // pred_fallthru
          _
        %s1534 = sand.u32 %s410, 1
        %s1535 = scalar_lea.sflag [#allocation6], %s1534
        %s1536 = sand.u32 %s410, 1
        %s1537 = smul.addr %s1536, 8
        %s1538 = scalar_lea.vmem [#allocation5], %s1537
        // Predicated region
        $region89: #{encoder_layer.3} parent=79 // pred_check
          %p1539 = pneg %p420
        $region90: #{encoder_layer.3} parent=79 // pred_check_branch
          %1541 = sbr.rel (%p1539) target = $region92
        $region91: #{encoder_layer.3} parent=79 // pred_region
          %s1543 = ssub.s32 128, 128
          %1544 = vsyncadd %s1535, %s1543
          %s1545 = sadd.s32 %s35, %s34
          %s1546 = smul.addr %s1545, 128
          %s1547 = scalar_lea.hbm %s15, %s1546
          %s1549 = sshll.u32 %s1538, 4
          %s1550 = int_to_ptr.vmem [resolvable:$true] %s1549
          %1552 = dma.vmem_to_hbm [thread:$0]  %s1550, 128, %s1547, %s1535
        $region92: #{encoder_layer.3} parent=79 // pred_fallthru
          _
      $region80: #{encoder_layer.3} parent=5 // pred_fallthru
        _
      %p1553 = scmp.le.s32.totalorder 2, %s24
      // Predicated region
      $region93: #{encoder_layer.3} parent=5 // pred_check
        %p1554 = pneg %p1553
      $region94: #{encoder_layer.3} parent=5 // pred_check_branch
        %1556 = sbr.rel (%p1554) target = $region96
      $region95: #{encoder_layer.3} parent=5 // pred_region
        %s1557 = ssub.s32 %s24, 2
        // Predicated region
        $region97: #{encoder_layer.3} parent=95 // pred_check
          %p1558 = pneg %p426
        $region98: #{encoder_layer.3} parent=95 // pred_check_branch
          %1560 = sbr.rel (%p1558) target = $region100
        $region99: #{encoder_layer.3} parent=95 // pred_region
          %s1561 = sand.u32 %s411, 1
          %s1562 = scalar_lea.sflag [#allocation6], %s1561
          %s1563 = sand.u32 %s411, 1
          %s1564 = smul.addr %s1563, 8
          %s1565 = scalar_lea.vmem [#allocation5], %s1564
          %1566 = dma.done %s1562, 128
        $region100: #{encoder_layer.3} parent=95 // pred_fallthru
          _
      $region96: #{encoder_layer.3} parent=5 // pred_fallthru
        _
    $region6: #{encoder_layer.3} parent=1 // loop_footer
      %s28 = sadd.s32 1, %s24
    $region7: #{encoder_layer.3} parent=1 // loop_footer_branch
      %23 = sbr.rel target = $region3
    $region8: #{encoder_layer.3} parent=1 // loop_exit
      _
    %1567 = vsyncpa [#allocation6], 1
    %s1568 = scalar_lea.sflag [#allocation6], 1
    %1569 = vsyncpa %s1568, 1

</llo_original>
